<compile_context>
chip_gen: v7x
topology: tpu7x:2x2x1
jax: 0.10.0
libtpu: 0.0.40
codegen_flags: <defaults>
</compile_context>

<pallas_src>
import jax
import jax.numpy as jnp
import numpy as np
from jax.experimental import pallas as pl
from jax.experimental.pallas import tpu as pltpu

# ---- Configuration (small, self-consistent with the module) -------------------
# Net(input, H1, H2, H3, H4, H5, H6, H7, output, input_conv, Wrg, Waz); H2/H6 unused.
INPUT = 4                       # conv channels AND linear1 in-features
H1, H3, H4 = 32, 16, 8
H5, H7, OUT = 16, 32, 10
WRG, WAZ = 3, 5                 # conv kernel (height, width)
N, C = 2, INPUT
HH = 10
WW = WAZ + INPUT - 1            # conv output width == INPUT (required by linear1)
OH, OW = HH - WRG + 1, WW - WAZ + 1
assert OW == INPUT
GRP = N * OH                    # 16 independent (n, oh) groups
KG = WRG * WAZ * C              # 60 im2col features per group
M = GRP * C                     # 64 rows through the MLP, ordered (n, oh, co)
PAD = 128                       # common lane width
KBD = 1024                      # padded contraction dim of the block-diag conv matmul
assert KBD >= GRP * KG

NEG = 0.01                      # F.leaky_relu default negative_slope
NEG_INF = -1e30                 # finite "-inf" for the softmax lane mask


def _leaky(x):
    return jnp.where(x >= 0, x, NEG * x)


# ---------------- Fused kernel: conv + leaky + encoder + decoder + softmax -----
def fused_kernel(wbd_ref, p_ref, w1_ref, w3_ref, w4_ref, w5_ref, w7_ref, w8_ref,
                 probs_ref, z_ref, c_ref):
    # Conv2d (valid, no bias) as ONE MXU matmul:
    #   block-diag weights (M, KBD) @ im2col patches (KBD, PAD) -> (M, PAD)
    # Rows are already (n, oh, co); live lanes are ow (= MLP feature axis), so
    # no in-kernel reshape / transpose is needed anywhere.
    d = jnp.dot(wbd_ref[...], p_ref[...], preferred_element_type=jnp.float32)
    c = _leaky(d)                               # f32; padded lanes stay exactly 0
    c_ref[...] = c                              # lane-dense 128-wide store

    def mm(a, w_ref):                           # bf16 operands, f32 accumulate (MXU)
        return jnp.dot(a.astype(jnp.bfloat16), w_ref[...],
                       preferred_element_type=jnp.float32)

    # Encoder (weights zero-padded to 128x128 -> lane-dense activations).
    h = _leaky(mm(c, w1_ref))                   # live lanes [:H1]
    h = _leaky(mm(h, w3_ref))                   # live lanes [:H3]
    z = _leaky(mm(h, w4_ref))                   # live lanes [:H4]
    z_ref[...] = z                              # unmasked 128-wide store

    # Decoder.
    h = _leaky(mm(z, w5_ref))                   # live lanes [:H5]
    h = _leaky(mm(h, w7_ref))                   # live lanes [:H7]
    logits = mm(h, w8_ref)                      # live lanes [:OUT]

    # Softmax over the OUT real lanes (padded lanes masked to -inf -> exp == 0).
    lane = jax.lax.broadcasted_iota(jnp.int32, logits.shape, 1)
    logits = jnp.where(lane < OUT, logits, NEG_INF)
    mx = jnp.max(logits, axis=-1, keepdims=True)
    e = jnp.exp(logits - mx)
    inv = pl.reciprocal(jnp.sum(e, axis=-1, keepdims=True), approx=True)  # EUP slot
    probs_ref[...] = e * inv                    # unmasked 128-wide store


def _vmem():
    return pl.BlockSpec(memory_space=pltpu.MemorySpace.VMEM)


_fused_call = pl.pallas_call(
    fused_kernel,
    out_shape=(jax.ShapeDtypeStruct((M, PAD), jnp.float32),   # padded probs
               jax.ShapeDtypeStruct((M, PAD), jnp.float32),   # padded z
               jax.ShapeDtypeStruct((M, PAD), jnp.float32)),  # padded c
    # No grid: single invocation, whole arrays resident in VMEM,
    # no double-buffering / pipeline bookkeeping.
    in_specs=[_vmem() for _ in range(8)],
    out_specs=(_vmem(), _vmem(), _vmem()),
)


# ---------------- One-time host-side parameter preparation ---------------------
def prepare_params(w_conv, lin_weights):
    """Host-side numpy, runs once (outside the traced forward path).

    w_conv: (Cout, Cin, KH, KW) torch OIHW conv weight.
    lin_weights: the six torch (out, in) linear weight matrices.

    Returns bf16 kernel-ready arrays:
      * wbd (M, KBD): block-diagonal conv weight.  Row C*g+co, columns
        [KG*g, KG*(g+1)) hold w[co, ci, kh, kw] in (kh, kw, ci) order, so that
        wbd @ patches gives the conv output with rows (n, oh, co), lanes ow.
      * six (PAD, PAD) zero-padded (in, out) linear weights.
    """
    w = np.asarray(w_conv, np.float32)
    wflat = w.transpose(2, 3, 1, 0).reshape(KG, C)     # [(kh,kw,ci), co]
    wbd = np.zeros((M, KBD), np.float32)
    for g in range(GRP):
        wbd[C * g:C * (g + 1), KG * g:KG * (g + 1)] = wflat.T

    def pad_w(wt):
        wt = np.asarray(wt, np.float32).T              # (in, out)
        out = np.zeros((PAD, PAD), np.float32)
        out[:wt.shape[0], :wt.shape[1]] = wt
        return jnp.asarray(out, jnp.bfloat16)

    w1, w3, w4, w5, w7, w8 = lin_weights
    return (jnp.asarray(wbd, jnp.bfloat16),
            pad_w(w1), pad_w(w3), pad_w(w4), pad_w(w5), pad_w(w7), pad_w(w8))


def _im2col_patches(x):
    """Wrapper-side layout plumbing (XLA): conv matmul RHS.

    Row (g, kh, kw, ci) with g = n*OH + oh, lane ow  ->  x[n, ci, oh+kh, ow+kw].
    """
    cols = []
    for kh in range(WRG):
        for kw in range(WAZ):
            sl = x[:, :, kh:kh + OH, kw:kw + OW]          # (N, Cin, OH, OW)
            cols.append(jnp.transpose(sl, (0, 2, 1, 3)))  # (N, OH, Cin, OW)
    p = jnp.stack(cols, axis=2)                           # (N, OH, taps, Cin, OW)
    p = p.reshape(GRP * KG, OW)                           # rows (n, oh, kh, kw, ci)
    p = jnp.pad(p, ((0, KBD - GRP * KG), (0, PAD - OW)))  # zero-pad to (KBD, PAD)
    return p.astype(jnp.bfloat16)


@jax.jit
def net_forward(x, wbd, w1p, w3p, w4p, w5p, w7p, w8p):
    patches = _im2col_patches(x)
    probs_pad, z_pad, c_pad = _fused_call(wbd, patches, w1p, w3p, w4p, w5p, w7p, w8p)
    # Kernel rows are (n, oh, co); recover the module's layouts (tiny XLA ops).
    c = c_pad[:, :OW].reshape(N, OH, C, OW).transpose(0, 2, 1, 3)        # (N, C, OH, OW)
    z = z_pad[:, :H4].reshape(N, OH, C, H4).transpose(0, 2, 1, 3)        # (N, C, OH, H4)
    probs = probs_pad[:, :OUT].reshape(N, OH, C, OUT).transpose(0, 2, 1, 3)
    return probs, z, c


if __name__ == "__main__":
    key = jax.random.PRNGKey(0)
    ks = jax.random.split(key, 8)
    x = jax.random.normal(ks[0], (N, C, HH, WW), jnp.float32)
    # Parameters in torch layouts: Conv2d.weight OIHW, Linear.weight (out, in).
    w_conv = jax.random.normal(ks[1], (C, C, WRG, WAZ), jnp.float32) * 0.1
    w1 = jax.random.normal(ks[2], (H1, INPUT), jnp.float32) * 0.2
    w3 = jax.random.normal(ks[3], (H3, H1), jnp.float32) * 0.2
    w4 = jax.random.normal(ks[4], (H4, H3), jnp.float32) * 0.2
    w5 = jax.random.normal(ks[5], (H5, H4), jnp.float32) * 0.2
    w7 = jax.random.normal(ks[6], (H7, H5), jnp.float32) * 0.2
    w8 = jax.random.normal(ks[7], (OUT, H7), jnp.float32) * 0.2

    params = prepare_params(w_conv, (w1, w3, w4, w5, w7, w8))
    probs, z, c = net_forward(x, *params)
    jax.block_until_ready((probs, z, c))

    # --- pure-JAX f32 reference check ---
    c_ref = jax.lax.conv_general_dilated(x, w_conv, (1, 1), "VALID",
                                         dimension_numbers=("NCHW", "OIHW", "NCHW"))

    def lk(a):
        return jnp.where(a >= 0, a, NEG * a)

    c_ref = lk(c_ref)
    h = lk(c_ref @ w1.T)
    h = lk(h @ w3.T)
    z_ref = lk(h @ w4.T)
    h = lk(z_ref @ w5.T)
    h = lk(h @ w7.T)
    p_ref = jax.nn.softmax(h @ w8.T, axis=-1)

    np.testing.assert_allclose(np.asarray(c), np.asarray(c_ref), rtol=2e-2, atol=2e-2)
    np.testing.assert_allclose(np.asarray(z), np.asarray(z_ref), rtol=2e-2, atol=2e-2)
    np.testing.assert_allclose(np.asarray(probs), np.asarray(p_ref), rtol=2e-2, atol=2e-2)

    print("KERNEL_OK")
</pallas_src>

<mosaic_0001>
module attributes {stable_mosaic.version = 11 : i64} {
  func.func @fused_kernel(%arg0: memref<64x1024xbf16, #tpu.memory_space<vmem>>, %arg1: memref<1024x128xbf16, #tpu.memory_space<vmem>>, %arg2: memref<128x128xbf16, #tpu.memory_space<vmem>>, %arg3: memref<128x128xbf16, #tpu.memory_space<vmem>>, %arg4: memref<128x128xbf16, #tpu.memory_space<vmem>>, %arg5: memref<128x128xbf16, #tpu.memory_space<vmem>>, %arg6: memref<128x128xbf16, #tpu.memory_space<vmem>>, %arg7: memref<128x128xbf16, #tpu.memory_space<vmem>>, %arg8: memref<64x128xf32, #tpu.memory_space<vmem>>, %arg9: memref<64x128xf32, #tpu.memory_space<vmem>>, %arg10: memref<64x128xf32, #tpu.memory_space<vmem>>) attributes {dimension_semantics = [], scalar_prefetch = 0 : i64, scratch_operands = 0 : i64, tpu.core_type = #tpu.core_type<tc>} {
    %c0 = arith.constant 0 : index
    %c0_0 = arith.constant 0 : index
    %0 = vector.load %arg0[%c0, %c0_0] : memref<64x1024xbf16, #tpu.memory_space<vmem>>, vector<64x1024xbf16>
    %c0_1 = arith.constant 0 : index
    %c0_2 = arith.constant 0 : index
    %1 = vector.load %arg1[%c0_1, %c0_2] : memref<1024x128xbf16, #tpu.memory_space<vmem>>, vector<1024x128xbf16>
    %cst = arith.constant dense<0.000000e+00> : vector<64x128xf32>
    %2 = tpu.matmul %0, %1, %cst {dimension_numbers = #tpu.dot_dimension_numbers<[1], [0], [0], [1], [0, 0, 1, 1], [], []>} : vector<64x1024xbf16>, vector<1024x128xbf16>, vector<64x128xf32> -> vector<64x128xf32>
    %cst_3 = arith.constant 0.000000e+00 : f32
    %3 = vector.broadcast %cst_3 : f32 to vector<64x128xf32>
    %4 = arith.cmpf oge, %2, %3 : vector<64x128xf32>
    %cst_4 = arith.constant 0.00999999977 : f32
    %5 = vector.broadcast %cst_4 : f32 to vector<64x128xf32>
    %6 = arith.mulf %5, %2 : vector<64x128xf32>
    %7 = arith.select %4, %2, %6 : vector<64x128xi1>, vector<64x128xf32>
    %c0_5 = arith.constant 0 : index
    %c0_6 = arith.constant 0 : index
    %8 = vector.load %arg10[%c0_5, %c0_6] : memref<64x128xf32, #tpu.memory_space<vmem>>, vector<64x128xf32>
    tpu.vector_store %arg10[%c0_5, %c0_6], %7 {strides = array<i32>} : memref<64x128xf32, #tpu.memory_space<vmem>>, vector<64x128xf32>,
    %9 = arith.truncf %7 : vector<64x128xf32> to vector<64x128xbf16>
    %c0_7 = arith.constant 0 : index
    %c0_8 = arith.constant 0 : index
    %10 = vector.load %arg2[%c0_7, %c0_8] : memref<128x128xbf16, #tpu.memory_space<vmem>>, vector<128x128xbf16>
    %cst_9 = arith.constant dense<0.000000e+00> : vector<64x128xf32>
    %11 = tpu.matmul %9, %10, %cst_9 {dimension_numbers = #tpu.dot_dimension_numbers<[1], [0], [0], [1], [0, 0, 1, 1], [], []>} : vector<64x128xbf16>, vector<128x128xbf16>, vector<64x128xf32> -> vector<64x128xf32>
    %cst_10 = arith.constant 0.000000e+00 : f32
    %12 = vector.broadcast %cst_10 : f32 to vector<64x128xf32>
    %13 = arith.cmpf oge, %11, %12 : vector<64x128xf32>
    %cst_11 = arith.constant 0.00999999977 : f32
    %14 = vector.broadcast %cst_11 : f32 to vector<64x128xf32>
    %15 = arith.mulf %14, %11 : vector<64x128xf32>
    %16 = arith.select %13, %11, %15 : vector<64x128xi1>, vector<64x128xf32>
    %17 = arith.truncf %16 : vector<64x128xf32> to vector<64x128xbf16>
    %c0_12 = arith.constant 0 : index
    %c0_13 = arith.constant 0 : index
    %18 = vector.load %arg3[%c0_12, %c0_13] : memref<128x128xbf16, #tpu.memory_space<vmem>>, vector<128x128xbf16>
    %cst_14 = arith.constant dense<0.000000e+00> : vector<64x128xf32>
    %19 = tpu.matmul %17, %18, %cst_14 {dimension_numbers = #tpu.dot_dimension_numbers<[1], [0], [0], [1], [0, 0, 1, 1], [], []>} : vector<64x128xbf16>, vector<128x128xbf16>, vector<64x128xf32> -> vector<64x128xf32>
    %cst_15 = arith.constant 0.000000e+00 : f32
    %20 = vector.broadcast %cst_15 : f32 to vector<64x128xf32>
    %21 = arith.cmpf oge, %19, %20 : vector<64x128xf32>
    %cst_16 = arith.constant 0.00999999977 : f32
    %22 = vector.broadcast %cst_16 : f32 to vector<64x128xf32>
    %23 = arith.mulf %22, %19 : vector<64x128xf32>
    %24 = arith.select %21, %19, %23 : vector<64x128xi1>, vector<64x128xf32>
    %25 = arith.truncf %24 : vector<64x128xf32> to vector<64x128xbf16>
    %c0_17 = arith.constant 0 : index
    %c0_18 = arith.constant 0 : index
    %26 = vector.load %arg4[%c0_17, %c0_18] : memref<128x128xbf16, #tpu.memory_space<vmem>>, vector<128x128xbf16>
    %cst_19 = arith.constant dense<0.000000e+00> : vector<64x128xf32>
    %27 = tpu.matmul %25, %26, %cst_19 {dimension_numbers = #tpu.dot_dimension_numbers<[1], [0], [0], [1], [0, 0, 1, 1], [], []>} : vector<64x128xbf16>, vector<128x128xbf16>, vector<64x128xf32> -> vector<64x128xf32>
    %cst_20 = arith.constant 0.000000e+00 : f32
    %28 = vector.broadcast %cst_20 : f32 to vector<64x128xf32>
    %29 = arith.cmpf oge, %27, %28 : vector<64x128xf32>
    %cst_21 = arith.constant 0.00999999977 : f32
    %30 = vector.broadcast %cst_21 : f32 to vector<64x128xf32>
    %31 = arith.mulf %30, %27 : vector<64x128xf32>
    %32 = arith.select %29, %27, %31 : vector<64x128xi1>, vector<64x128xf32>
    %c0_22 = arith.constant 0 : index
    %c0_23 = arith.constant 0 : index
    %33 = vector.load %arg9[%c0_22, %c0_23] : memref<64x128xf32, #tpu.memory_space<vmem>>, vector<64x128xf32>
    tpu.vector_store %arg9[%c0_22, %c0_23], %32 {strides = array<i32>} : memref<64x128xf32, #tpu.memory_space<vmem>>, vector<64x128xf32>,
    %34 = arith.truncf %32 : vector<64x128xf32> to vector<64x128xbf16>
    %c0_24 = arith.constant 0 : index
    %c0_25 = arith.constant 0 : index
    %35 = vector.load %arg5[%c0_24, %c0_25] : memref<128x128xbf16, #tpu.memory_space<vmem>>, vector<128x128xbf16>
    %cst_26 = arith.constant dense<0.000000e+00> : vector<64x128xf32>
    %36 = tpu.matmul %34, %35, %cst_26 {dimension_numbers = #tpu.dot_dimension_numbers<[1], [0], [0], [1], [0, 0, 1, 1], [], []>} : vector<64x128xbf16>, vector<128x128xbf16>, vector<64x128xf32> -> vector<64x128xf32>
    %cst_27 = arith.constant 0.000000e+00 : f32
    %37 = vector.broadcast %cst_27 : f32 to vector<64x128xf32>
    %38 = arith.cmpf oge, %36, %37 : vector<64x128xf32>
    %cst_28 = arith.constant 0.00999999977 : f32
    %39 = vector.broadcast %cst_28 : f32 to vector<64x128xf32>
    %40 = arith.mulf %39, %36 : vector<64x128xf32>
    %41 = arith.select %38, %36, %40 : vector<64x128xi1>, vector<64x128xf32>
    %42 = arith.truncf %41 : vector<64x128xf32> to vector<64x128xbf16>
    %c0_29 = arith.constant 0 : index
    %c0_30 = arith.constant 0 : index
    %43 = vector.load %arg6[%c0_29, %c0_30] : memref<128x128xbf16, #tpu.memory_space<vmem>>, vector<128x128xbf16>
    %cst_31 = arith.constant dense<0.000000e+00> : vector<64x128xf32>
    %44 = tpu.matmul %42, %43, %cst_31 {dimension_numbers = #tpu.dot_dimension_numbers<[1], [0], [0], [1], [0, 0, 1, 1], [], []>} : vector<64x128xbf16>, vector<128x128xbf16>, vector<64x128xf32> -> vector<64x128xf32>
    %cst_32 = arith.constant 0.000000e+00 : f32
    %45 = vector.broadcast %cst_32 : f32 to vector<64x128xf32>
    %46 = arith.cmpf oge, %44, %45 : vector<64x128xf32>
    %cst_33 = arith.constant 0.00999999977 : f32
    %47 = vector.broadcast %cst_33 : f32 to vector<64x128xf32>
    %48 = arith.mulf %47, %44 : vector<64x128xf32>
    %49 = arith.select %46, %44, %48 : vector<64x128xi1>, vector<64x128xf32>
    %50 = arith.truncf %49 : vector<64x128xf32> to vector<64x128xbf16>
    %c0_34 = arith.constant 0 : index
    %c0_35 = arith.constant 0 : index
    %51 = vector.load %arg7[%c0_34, %c0_35] : memref<128x128xbf16, #tpu.memory_space<vmem>>, vector<128x128xbf16>
    %cst_36 = arith.constant dense<0.000000e+00> : vector<64x128xf32>
    %52 = tpu.matmul %50, %51, %cst_36 {dimension_numbers = #tpu.dot_dimension_numbers<[1], [0], [0], [1], [0, 0, 1, 1], [], []>} : vector<64x128xbf16>, vector<128x128xbf16>, vector<64x128xf32> -> vector<64x128xf32>
    %53 = tpu.iota {dimensions = array<i32: 1>} : vector<64x128xi32>
    %c10_i32 = arith.constant 10 : i32
    %54 = vector.broadcast %c10_i32 : i32 to vector<64x128xi32>
    %55 = arith.cmpi slt, %53, %54 : vector<64x128xi32>
    %cst_37 = arith.constant -1.000000e+30 : f32
    %56 = vector.broadcast %cst_37 : f32 to vector<64x128xf32>
    %57 = arith.select %55, %52, %56 : vector<64x128xi1>, vector<64x128xf32>
    %cst_38 = arith.constant dense<0xFF800000> : vector<64xf32>
    %58 = vector.multi_reduction <maximumf>, %57, %cst_38 [1] : vector<64x128xf32> to vector<64xf32>
    %59 = vector.shape_cast %58 : vector<64xf32> to vector<64x1xf32>
    %60 = vector.broadcast %59 : vector<64x1xf32> to vector<64x128xf32>
    %61 = arith.subf %57, %60 : vector<64x128xf32>
    %62 = math.exp %61 : vector<64x128xf32>
    %cst_39 = arith.constant dense<0.000000e+00> : vector<64xf32>
    %63 = vector.multi_reduction <add>, %62, %cst_39 [1] : vector<64x128xf32> to vector<64xf32>
    %64 = vector.shape_cast %63 : vector<64xf32> to vector<64x1xf32>
    %65 = tpu.reciprocal %64 {approx = true} : vector<64x1xf32> -> vector<64x1xf32>
    %66 = vector.broadcast %65 : vector<64x1xf32> to vector<64x128xf32>
    %67 = arith.mulf %62, %66 : vector<64x128xf32>
    %c0_40 = arith.constant 0 : index
    %c0_41 = arith.constant 0 : index
    %68 = vector.load %arg8[%c0_40, %c0_41] : memref<64x128xf32, #tpu.memory_space<vmem>>, vector<64x128xf32>
    tpu.vector_store %arg8[%c0_40, %c0_41], %67 {strides = array<i32>} : memref<64x128xf32, #tpu.memory_space<vmem>>, vector<64x128xf32>,
    return
  }
}

</mosaic_0001>

<llo_original>
// kernel: net_forward.1
$region0: #{net_forward.1}
  #allocation0 [shape = 'u32[]', space=smem, size = 0x4, offset = 0x4, fixed_abs, tag = 'smem constant byte address 0x4 - core index']
  #allocation1 [shape = 'u32[144,128]{1,0:T(1,128)}', space=vmem, size = 0x12000, scoped, tag = 'internal scratch']
  %s0 = inlined_call_operand.vmem [shape: bf16[64,1024], index: 0, kind: input, shape index: {}]
  %s1 = inlined_call_operand.vmem [shape: bf16[1024,128], index: 1, kind: input, shape index: {}]
  %s2 = inlined_call_operand.vmem [shape: bf16[128,128], index: 2, kind: input, shape index: {}]
  %s3 = inlined_call_operand.vmem [shape: bf16[128,128], index: 3, kind: input, shape index: {}]
  %s4 = inlined_call_operand.vmem [shape: bf16[128,128], index: 4, kind: input, shape index: {}]
  %s5 = inlined_call_operand.vmem [shape: bf16[128,128], index: 5, kind: input, shape index: {}]
  %s6 = inlined_call_operand.vmem [shape: bf16[128,128], index: 6, kind: input, shape index: {}]
  %s7 = inlined_call_operand.vmem [shape: bf16[128,128], index: 7, kind: input, shape index: {}]
  %s8 = inlined_call_operand.vmem [shape: f32[64,128], index: 8, kind: output, shape index: {0}]
  %s9 = inlined_call_operand.vmem [shape: f32[64,128], index: 9, kind: output, shape index: {1}]
  %s10 = inlined_call_operand.vmem [shape: f32[64,128], index: 10, kind: output, shape index: {2}]
  %11 = xla_tuple %s8, %s9, %s10
  %s12 = sld [smem:[#allocation0]]
  $region58: #{net_forward.1} parent=0
    _
  %s14 = ssub.s32 1, %s12
  %s15 = scalar_select 0, %s14, %s12
  // Predicated region
  $region2: #{net_forward.1} parent=0 // pred_check
    _
  $region3: #{net_forward.1} parent=0 // pred_check_branch
    %17 = sbr.rel (0) target = $region5
  $region4: #{net_forward.1} parent=0 // pred_region
    _
  $region5: #{net_forward.1} parent=0 // pred_fallthru
    _
  // Predicated region
  $region6: #{net_forward.1} parent=0 // pred_check
    _
  $region7: #{net_forward.1} parent=0 // pred_check_branch
    %19 = sbr.rel (0) target = $region9
  $region8: #{net_forward.1} parent=0 // pred_region
    _
  $region9: #{net_forward.1} parent=0 // pred_fallthru
    _
  // Predicated region
  $region10: #{net_forward.1} parent=0 // pred_check
    _
  $region11: #{net_forward.1} parent=0 // pred_check_branch
    %21 = sbr.rel (0) target = $region13
  $region12: #{net_forward.1} parent=0 // pred_region
    _
  $region13: #{net_forward.1} parent=0 // pred_fallthru
    _
  // Predicated region
  $region14: #{net_forward.1} parent=0 // pred_check
    _
  $region15: #{net_forward.1} parent=0 // pred_check_branch
    %23 = sbr.rel (0) target = $region17
  $region16: #{net_forward.1} parent=0 // pred_region
    _
  $region17: #{net_forward.1} parent=0 // pred_fallthru
    _
  // Predicated region
  $region18: #{net_forward.1} parent=0 // pred_check
    _
  $region19: #{net_forward.1} parent=0 // pred_check_branch
    %25 = sbr.rel (0) target = $region21
  $region20: #{net_forward.1} parent=0 // pred_region
    _
  $region21: #{net_forward.1} parent=0 // pred_fallthru
    _
  // Predicated region
  $region22: #{net_forward.1} parent=0 // pred_check
    _
  $region23: #{net_forward.1} parent=0 // pred_check_branch
    %27 = sbr.rel (0) target = $region25
  $region24: #{net_forward.1} parent=0 // pred_region
    _
  $region25: #{net_forward.1} parent=0 // pred_fallthru
    _
  // Predicated region
  $region26: #{net_forward.1} parent=0 // pred_check
    _
  $region27: #{net_forward.1} parent=0 // pred_check_branch
    %29 = sbr.rel (0) target = $region29
  $region28: #{net_forward.1} parent=0 // pred_region
    _
  $region29: #{net_forward.1} parent=0 // pred_fallthru
    _
  // Predicated region
  $region30: #{net_forward.1} parent=0 // pred_check
    _
  $region31: #{net_forward.1} parent=0 // pred_check_branch
    %31 = sbr.rel (0) target = $region33
  $region32: #{net_forward.1} parent=0 // pred_region
    _
  $region33: #{net_forward.1} parent=0 // pred_fallthru
    _
  %v33 = vld [vmem:[%s0] sm:$0xff]
  %v34 = vld [vmem:[%s0 + $0x8] sm:$0xff]
  %v35 = vld [vmem:[%s0 + $0x10] sm:$0xff]
  %v36 = vld [vmem:[%s0 + $0x18] sm:$0xff]
  %v37 = vld [vmem:[%s0 + $0x20] sm:$0xff]
  %v38 = vld [vmem:[%s0 + $0x28] sm:$0xff]
  %v39 = vld [vmem:[%s0 + $0x30] sm:$0xff]
  %v40 = vld [vmem:[%s0 + $0x38] sm:$0xff]
  %v41 = vld [vmem:[%s0 + $0x40] sm:$0xff]
  %v42 = vld [vmem:[%s0 + $0x48] sm:$0xff]
  %v43 = vld [vmem:[%s0 + $0x50] sm:$0xff]
  %v44 = vld [vmem:[%s0 + $0x58] sm:$0xff]
  %v45 = vld [vmem:[%s0 + $0x60] sm:$0xff]
  %v46 = vld [vmem:[%s0 + $0x68] sm:$0xff]
  %v47 = vld [vmem:[%s0 + $0x70] sm:$0xff]
  %v48 = vld [vmem:[%s0 + $0x78] sm:$0xff]
  %v49 = vld [vmem:[%s0 + $0x80] sm:$0xff]
  %v50 = vld [vmem:[%s0 + $0x88] sm:$0xff]
  %v51 = vld [vmem:[%s0 + $0x90] sm:$0xff]
  %v52 = vld [vmem:[%s0 + $0x98] sm:$0xff]
  %v53 = vld [vmem:[%s0 + $0xa0] sm:$0xff]
  %v54 = vld [vmem:[%s0 + $0xa8] sm:$0xff]
  %v55 = vld [vmem:[%s0 + $0xb0] sm:$0xff]
  %v56 = vld [vmem:[%s0 + $0xb8] sm:$0xff]
  %v57 = vld [vmem:[%s0 + $0xc0] sm:$0xff]
  %v58 = vld [vmem:[%s0 + $0xc8] sm:$0xff]
  %v59 = vld [vmem:[%s0 + $0xd0] sm:$0xff]
  %v60 = vld [vmem:[%s0 + $0xd8] sm:$0xff]
  %v61 = vld [vmem:[%s0 + $0xe0] sm:$0xff]
  %v62 = vld [vmem:[%s0 + $0xe8] sm:$0xff]
  %v63 = vld [vmem:[%s0 + $0xf0] sm:$0xff]
  %v64 = vld [vmem:[%s0 + $0xf8] sm:$0xff]
  %v65 = vld [vmem:[%s1] sm:$0xf]
  %v66 = vld [vmem:[%s1 + $0x4] sm:$0xf]
  %v67 = vld [vmem:[%s1 + $0x8] sm:$0xf]
  %v68 = vld [vmem:[%s1 + $0xc] sm:$0xf]
  %v69 = vld [vmem:[%s1 + $0x10] sm:$0xf]
  %v70 = vld [vmem:[%s1 + $0x14] sm:$0xf]
  %v71 = vld [vmem:[%s1 + $0x18] sm:$0xf]
  %v72 = vld [vmem:[%s1 + $0x1c] sm:$0xf]
  %v73 = vld [vmem:[%s1 + $0x20] sm:$0xf]
  %v74 = vld [vmem:[%s1 + $0x24] sm:$0xf]
  %v75 = vld [vmem:[%s1 + $0x28] sm:$0xf]
  %v76 = vld [vmem:[%s1 + $0x2c] sm:$0xf]
  %v77 = vld [vmem:[%s1 + $0x30] sm:$0xf]
  %v78 = vld [vmem:[%s1 + $0x34] sm:$0xf]
  %v79 = vld [vmem:[%s1 + $0x38] sm:$0xf]
  %v80 = vld [vmem:[%s1 + $0x3c] sm:$0xf]
  %v81 = vld [vmem:[%s1 + $0x40] sm:$0xf]
  %v82 = vld [vmem:[%s1 + $0x44] sm:$0xf]
  %v83 = vld [vmem:[%s1 + $0x48] sm:$0xf]
  %v84 = vld [vmem:[%s1 + $0x4c] sm:$0xf]
  %v85 = vld [vmem:[%s1 + $0x50] sm:$0xf]
  %v86 = vld [vmem:[%s1 + $0x54] sm:$0xf]
  %v87 = vld [vmem:[%s1 + $0x58] sm:$0xf]
  %v88 = vld [vmem:[%s1 + $0x5c] sm:$0xf]
  %v89 = vld [vmem:[%s1 + $0x60] sm:$0xf]
  %v90 = vld [vmem:[%s1 + $0x64] sm:$0xf]
  %v91 = vld [vmem:[%s1 + $0x68] sm:$0xf]
  %v92 = vld [vmem:[%s1 + $0x6c] sm:$0xf]
  %v93 = vld [vmem:[%s1 + $0x70] sm:$0xf]
  %v94 = vld [vmem:[%s1 + $0x74] sm:$0xf]
  %v95 = vld [vmem:[%s1 + $0x78] sm:$0xf]
  %v96 = vld [vmem:[%s1 + $0x7c] sm:$0xf]
  %v97 = vld [vmem:[%s1 + $0x80] sm:$0xf]
  %v98 = vld [vmem:[%s1 + $0x84] sm:$0xf]
  %v99 = vld [vmem:[%s1 + $0x88] sm:$0xf]
  %v100 = vld [vmem:[%s1 + $0x8c] sm:$0xf]
  %v101 = vld [vmem:[%s1 + $0x90] sm:$0xf]
  %v102 = vld [vmem:[%s1 + $0x94] sm:$0xf]
  %v103 = vld [vmem:[%s1 + $0x98] sm:$0xf]
  %v104 = vld [vmem:[%s1 + $0x9c] sm:$0xf]
  %v105 = vld [vmem:[%s1 + $0xa0] sm:$0xf]
  %v106 = vld [vmem:[%s1 + $0xa4] sm:$0xf]
  %v107 = vld [vmem:[%s1 + $0xa8] sm:$0xf]
  %v108 = vld [vmem:[%s1 + $0xac] sm:$0xf]
  %v109 = vld [vmem:[%s1 + $0xb0] sm:$0xf]
  %v110 = vld [vmem:[%s1 + $0xb4] sm:$0xf]
  %v111 = vld [vmem:[%s1 + $0xb8] sm:$0xf]
  %v112 = vld [vmem:[%s1 + $0xbc] sm:$0xf]
  %v113 = vld [vmem:[%s1 + $0xc0] sm:$0xf]
  %v114 = vld [vmem:[%s1 + $0xc4] sm:$0xf]
  %v115 = vld [vmem:[%s1 + $0xc8] sm:$0xf]
  %v116 = vld [vmem:[%s1 + $0xcc] sm:$0xf]
  %v117 = vld [vmem:[%s1 + $0xd0] sm:$0xf]
  %v118 = vld [vmem:[%s1 + $0xd4] sm:$0xf]
  %v119 = vld [vmem:[%s1 + $0xd8] sm:$0xf]
  %v120 = vld [vmem:[%s1 + $0xdc] sm:$0xf]
  %v121 = vld [vmem:[%s1 + $0xe0] sm:$0xf]
  %v122 = vld [vmem:[%s1 + $0xe4] sm:$0xf]
  %v123 = vld [vmem:[%s1 + $0xe8] sm:$0xf]
  %v124 = vld [vmem:[%s1 + $0xec] sm:$0xf]
  %v125 = vld [vmem:[%s1 + $0xf0] sm:$0xf]
  %v126 = vld [vmem:[%s1 + $0xf4] sm:$0xf]
  %v127 = vld [vmem:[%s1 + $0xf8] sm:$0xf]
  %v128 = vld [vmem:[%s1 + $0xfc] sm:$0xf]
  %v129 = vld [vmem:[%s1 + $0x100] sm:$0xf]
  %v130 = vld [vmem:[%s1 + $0x104] sm:$0xf]
  %v131 = vld [vmem:[%s1 + $0x108] sm:$0xf]
  %v132 = vld [vmem:[%s1 + $0x10c] sm:$0xf]
  %v133 = vld [vmem:[%s1 + $0x110] sm:$0xf]
  %v134 = vld [vmem:[%s1 + $0x114] sm:$0xf]
  %v135 = vld [vmem:[%s1 + $0x118] sm:$0xf]
  %v136 = vld [vmem:[%s1 + $0x11c] sm:$0xf]
  %v137 = vld [vmem:[%s1 + $0x120] sm:$0xf]
  %v138 = vld [vmem:[%s1 + $0x124] sm:$0xf]
  %v139 = vld [vmem:[%s1 + $0x128] sm:$0xf]
  %v140 = vld [vmem:[%s1 + $0x12c] sm:$0xf]
  %v141 = vld [vmem:[%s1 + $0x130] sm:$0xf]
  %v142 = vld [vmem:[%s1 + $0x134] sm:$0xf]
  %v143 = vld [vmem:[%s1 + $0x138] sm:$0xf]
  %v144 = vld [vmem:[%s1 + $0x13c] sm:$0xf]
  %v145 = vld [vmem:[%s1 + $0x140] sm:$0xf]
  %v146 = vld [vmem:[%s1 + $0x144] sm:$0xf]
  %v147 = vld [vmem:[%s1 + $0x148] sm:$0xf]
  %v148 = vld [vmem:[%s1 + $0x14c] sm:$0xf]
  %v149 = vld [vmem:[%s1 + $0x150] sm:$0xf]
  %v150 = vld [vmem:[%s1 + $0x154] sm:$0xf]
  %v151 = vld [vmem:[%s1 + $0x158] sm:$0xf]
  %v152 = vld [vmem:[%s1 + $0x15c] sm:$0xf]
  %v153 = vld [vmem:[%s1 + $0x160] sm:$0xf]
  %v154 = vld [vmem:[%s1 + $0x164] sm:$0xf]
  %v155 = vld [vmem:[%s1 + $0x168] sm:$0xf]
  %v156 = vld [vmem:[%s1 + $0x16c] sm:$0xf]
  %v157 = vld [vmem:[%s1 + $0x170] sm:$0xf]
  %v158 = vld [vmem:[%s1 + $0x174] sm:$0xf]
  %v159 = vld [vmem:[%s1 + $0x178] sm:$0xf]
  %v160 = vld [vmem:[%s1 + $0x17c] sm:$0xf]
  %v161 = vld [vmem:[%s1 + $0x180] sm:$0xf]
  %v162 = vld [vmem:[%s1 + $0x184] sm:$0xf]
  %v163 = vld [vmem:[%s1 + $0x188] sm:$0xf]
  %v164 = vld [vmem:[%s1 + $0x18c] sm:$0xf]
  %v165 = vld [vmem:[%s1 + $0x190] sm:$0xf]
  %v166 = vld [vmem:[%s1 + $0x194] sm:$0xf]
  %v167 = vld [vmem:[%s1 + $0x198] sm:$0xf]
  %v168 = vld [vmem:[%s1 + $0x19c] sm:$0xf]
  %v169 = vld [vmem:[%s1 + $0x1a0] sm:$0xf]
  %v170 = vld [vmem:[%s1 + $0x1a4] sm:$0xf]
  %v171 = vld [vmem:[%s1 + $0x1a8] sm:$0xf]
  %v172 = vld [vmem:[%s1 + $0x1ac] sm:$0xf]
  %v173 = vld [vmem:[%s1 + $0x1b0] sm:$0xf]
  %v174 = vld [vmem:[%s1 + $0x1b4] sm:$0xf]
  %v175 = vld [vmem:[%s1 + $0x1b8] sm:$0xf]
  %v176 = vld [vmem:[%s1 + $0x1bc] sm:$0xf]
  %v177 = vld [vmem:[%s1 + $0x1c0] sm:$0xf]
  %v178 = vld [vmem:[%s1 + $0x1c4] sm:$0xf]
  %v179 = vld [vmem:[%s1 + $0x1c8] sm:$0xf]
  %v180 = vld [vmem:[%s1 + $0x1cc] sm:$0xf]
  %v181 = vld [vmem:[%s1 + $0x1d0] sm:$0xf]
  %v182 = vld [vmem:[%s1 + $0x1d4] sm:$0xf]
  %v183 = vld [vmem:[%s1 + $0x1d8] sm:$0xf]
  %v184 = vld [vmem:[%s1 + $0x1dc] sm:$0xf]
  %v185 = vld [vmem:[%s1 + $0x1e0] sm:$0xf]
  %v186 = vld [vmem:[%s1 + $0x1e4] sm:$0xf]
  %v187 = vld [vmem:[%s1 + $0x1e8] sm:$0xf]
  %v188 = vld [vmem:[%s1 + $0x1ec] sm:$0xf]
  %v189 = vld [vmem:[%s1 + $0x1f0] sm:$0xf]
  %v190 = vld [vmem:[%s1 + $0x1f4] sm:$0xf]
  %v191 = vld [vmem:[%s1 + $0x1f8] sm:$0xf]
  %v192 = vld [vmem:[%s1 + $0x1fc] sm:$0xf]
  %v225 = vunpack.c.l.b16 %v33
  %v226 = vunpack.c.h.b16 %v33
  %v227 = vunpack.c.l.b16 %v34
  %v228 = vunpack.c.h.b16 %v34
  %v229 = vunpack.c.l.b16 %v35
  %v230 = vunpack.c.h.b16 %v35
  %v231 = vunpack.c.l.b16 %v36
  %v232 = vunpack.c.h.b16 %v36
  %v233 = vunpack.c.l.b16 %v37
  %v234 = vunpack.c.h.b16 %v37
  %v235 = vunpack.c.l.b16 %v38
  %v236 = vunpack.c.h.b16 %v38
  %v237 = vunpack.c.l.b16 %v39
  %v238 = vunpack.c.h.b16 %v39
  %v239 = vunpack.c.l.b16 %v40
  %v240 = vunpack.c.h.b16 %v40
  %v241 = vunpack.c.l.b16 %v41
  %v242 = vunpack.c.h.b16 %v41
  %v243 = vunpack.c.l.b16 %v42
  %v244 = vunpack.c.h.b16 %v42
  %v245 = vunpack.c.l.b16 %v43
  %v246 = vunpack.c.h.b16 %v43
  %v247 = vunpack.c.l.b16 %v44
  %v248 = vunpack.c.h.b16 %v44
  %v249 = vunpack.c.l.b16 %v45
  %v250 = vunpack.c.h.b16 %v45
  %v251 = vunpack.c.l.b16 %v46
  %v252 = vunpack.c.h.b16 %v46
  %v253 = vunpack.c.l.b16 %v47
  %v254 = vunpack.c.h.b16 %v47
  %v255 = vunpack.c.l.b16 %v48
  %v256 = vunpack.c.h.b16 %v48
  %v257 = vunpack.c.l.b16 %v49
  %v258 = vunpack.c.h.b16 %v49
  %v259 = vunpack.c.l.b16 %v50
  %v260 = vunpack.c.h.b16 %v50
  %v261 = vunpack.c.l.b16 %v51
  %v262 = vunpack.c.h.b16 %v51
  %v263 = vunpack.c.l.b16 %v52
  %v264 = vunpack.c.h.b16 %v52
  %v265 = vunpack.c.l.b16 %v53
  %v266 = vunpack.c.h.b16 %v53
  %v267 = vunpack.c.l.b16 %v54
  %v268 = vunpack.c.h.b16 %v54
  %v269 = vunpack.c.l.b16 %v55
  %v270 = vunpack.c.h.b16 %v55
  %v271 = vunpack.c.l.b16 %v56
  %v272 = vunpack.c.h.b16 %v56
  %v273 = vunpack.c.l.b16 %v57
  %v274 = vunpack.c.h.b16 %v57
  %v275 = vunpack.c.l.b16 %v58
  %v276 = vunpack.c.h.b16 %v58
  %v277 = vunpack.c.l.b16 %v59
  %v278 = vunpack.c.h.b16 %v59
  %v279 = vunpack.c.l.b16 %v60
  %v280 = vunpack.c.h.b16 %v60
  %v281 = vunpack.c.l.b16 %v61
  %v282 = vunpack.c.h.b16 %v61
  %v283 = vunpack.c.l.b16 %v62
  %v284 = vunpack.c.h.b16 %v62
  %v285 = vunpack.c.l.b16 %v63
  %v286 = vunpack.c.h.b16 %v63
  %v287 = vunpack.c.l.b16 %v64
  %v288 = vunpack.c.h.b16 %v64
  %v289 = vpack.c.b16 %v233, %v225
  %v290 = vpack.c.b16 %v234, %v226
  %v291 = vpack.c.b16 %v235, %v227
  %v292 = vpack.c.b16 %v236, %v228
  %v293 = vpack.c.b16 %v237, %v229
  %v294 = vpack.c.b16 %v238, %v230
  %v295 = vpack.c.b16 %v239, %v231
  %v296 = vpack.c.b16 %v240, %v232
  %v297 = vpack.c.b16 %v249, %v241
  %v298 = vpack.c.b16 %v250, %v242
  %v299 = vpack.c.b16 %v251, %v243
  %v300 = vpack.c.b16 %v252, %v244
  %v301 = vpack.c.b16 %v253, %v245
  %v302 = vpack.c.b16 %v254, %v246
  %v303 = vpack.c.b16 %v255, %v247
  %v304 = vpack.c.b16 %v256, %v248
  %v305 = vpack.c.b16 %v265, %v257
  %v306 = vpack.c.b16 %v266, %v258
  %v307 = vpack.c.b16 %v267, %v259
  %v308 = vpack.c.b16 %v268, %v260
  %v309 = vpack.c.b16 %v269, %v261
  %v310 = vpack.c.b16 %v270, %v262
  %v311 = vpack.c.b16 %v271, %v263
  %v312 = vpack.c.b16 %v272, %v264
  %v313 = vpack.c.b16 %v281, %v273
  %v314 = vpack.c.b16 %v282, %v274
  %v315 = vpack.c.b16 %v283, %v275
  %v316 = vpack.c.b16 %v284, %v276
  %v317 = vpack.c.b16 %v285, %v277
  %v318 = vpack.c.b16 %v286, %v278
  %v319 = vpack.c.b16 %v287, %v279
  %v320 = vpack.c.b16 %v288, %v280
  %v481 = vunpack.c.l.b16 %v65
  %v482 = vunpack.c.l.b16 %v66
  %v483 = vunpack.c.l.b16 %v67
  %v484 = vunpack.c.l.b16 %v68
  %v485 = vunpack.c.l.b16 %v69
  %v486 = vunpack.c.l.b16 %v70
  %v487 = vunpack.c.l.b16 %v71
  %v488 = vunpack.c.l.b16 %v72
  %v489 = vunpack.c.l.b16 %v73
  %v490 = vunpack.c.l.b16 %v74
  %v491 = vunpack.c.l.b16 %v75
  %v492 = vunpack.c.l.b16 %v76
  %v493 = vunpack.c.l.b16 %v77
  %v494 = vunpack.c.l.b16 %v78
  %v495 = vunpack.c.l.b16 %v79
  %v496 = vunpack.c.l.b16 %v80
  %v497 = vunpack.c.l.b16 %v81
  %v498 = vunpack.c.l.b16 %v82
  %v499 = vunpack.c.l.b16 %v83
  %v500 = vunpack.c.l.b16 %v84
  %v501 = vunpack.c.l.b16 %v85
  %v502 = vunpack.c.l.b16 %v86
  %v503 = vunpack.c.l.b16 %v87
  %v504 = vunpack.c.l.b16 %v88
  %v505 = vunpack.c.l.b16 %v89
  %v506 = vunpack.c.l.b16 %v90
  %v507 = vunpack.c.l.b16 %v91
  %v508 = vunpack.c.l.b16 %v92
  %v509 = vunpack.c.l.b16 %v93
  %v510 = vunpack.c.l.b16 %v94
  %v511 = vunpack.c.l.b16 %v95
  %v512 = vunpack.c.l.b16 %v96
  %v513 = vunpack.c.l.b16 %v97
  %v514 = vunpack.c.l.b16 %v98
  %v515 = vunpack.c.l.b16 %v99
  %v516 = vunpack.c.l.b16 %v100
  %v517 = vunpack.c.l.b16 %v101
  %v518 = vunpack.c.l.b16 %v102
  %v519 = vunpack.c.l.b16 %v103
  %v520 = vunpack.c.l.b16 %v104
  %v521 = vunpack.c.l.b16 %v105
  %v522 = vunpack.c.l.b16 %v106
  %v523 = vunpack.c.l.b16 %v107
  %v524 = vunpack.c.l.b16 %v108
  %v525 = vunpack.c.l.b16 %v109
  %v526 = vunpack.c.l.b16 %v110
  %v527 = vunpack.c.l.b16 %v111
  %v528 = vunpack.c.l.b16 %v112
  %v529 = vunpack.c.l.b16 %v113
  %v530 = vunpack.c.l.b16 %v114
  %v531 = vunpack.c.l.b16 %v115
  %v532 = vunpack.c.l.b16 %v116
  %v533 = vunpack.c.l.b16 %v117
  %v534 = vunpack.c.l.b16 %v118
  %v535 = vunpack.c.l.b16 %v119
  %v536 = vunpack.c.l.b16 %v120
  %v537 = vunpack.c.l.b16 %v121
  %v538 = vunpack.c.l.b16 %v122
  %v539 = vunpack.c.l.b16 %v123
  %v540 = vunpack.c.l.b16 %v124
  %v541 = vunpack.c.l.b16 %v125
  %v542 = vunpack.c.l.b16 %v126
  %v543 = vunpack.c.l.b16 %v127
  %v544 = vunpack.c.l.b16 %v128
  %v545 = vunpack.c.l.b16 %v129
  %v546 = vunpack.c.l.b16 %v130
  %v547 = vunpack.c.l.b16 %v131
  %v548 = vunpack.c.l.b16 %v132
  %v549 = vunpack.c.l.b16 %v133
  %v550 = vunpack.c.l.b16 %v134
  %v551 = vunpack.c.l.b16 %v135
  %v552 = vunpack.c.l.b16 %v136
  %v553 = vunpack.c.l.b16 %v137
  %v554 = vunpack.c.l.b16 %v138
  %v555 = vunpack.c.l.b16 %v139
  %v556 = vunpack.c.l.b16 %v140
  %v557 = vunpack.c.l.b16 %v141
  %v558 = vunpack.c.l.b16 %v142
  %v559 = vunpack.c.l.b16 %v143
  %v560 = vunpack.c.l.b16 %v144
  %v561 = vunpack.c.l.b16 %v145
  %v562 = vunpack.c.l.b16 %v146
  %v563 = vunpack.c.l.b16 %v147
  %v564 = vunpack.c.l.b16 %v148
  %v565 = vunpack.c.l.b16 %v149
  %v566 = vunpack.c.l.b16 %v150
  %v567 = vunpack.c.l.b16 %v151
  %v568 = vunpack.c.l.b16 %v152
  %v569 = vunpack.c.l.b16 %v153
  %v570 = vunpack.c.l.b16 %v154
  %v571 = vunpack.c.l.b16 %v155
  %v572 = vunpack.c.l.b16 %v156
  %v573 = vunpack.c.l.b16 %v157
  %v574 = vunpack.c.l.b16 %v158
  %v575 = vunpack.c.l.b16 %v159
  %v576 = vunpack.c.l.b16 %v160
  %v577 = vunpack.c.l.b16 %v161
  %v578 = vunpack.c.l.b16 %v162
  %v579 = vunpack.c.l.b16 %v163
  %v580 = vunpack.c.l.b16 %v164
  %v581 = vunpack.c.l.b16 %v165
  %v582 = vunpack.c.l.b16 %v166
  %v583 = vunpack.c.l.b16 %v167
  %v584 = vunpack.c.l.b16 %v168
  %v585 = vunpack.c.l.b16 %v169
  %v586 = vunpack.c.l.b16 %v170
  %v587 = vunpack.c.l.b16 %v171
  %v588 = vunpack.c.l.b16 %v172
  %v589 = vunpack.c.l.b16 %v173
  %v590 = vunpack.c.l.b16 %v174
  %v591 = vunpack.c.l.b16 %v175
  %v592 = vunpack.c.l.b16 %v176
  %v593 = vunpack.c.l.b16 %v177
  %v594 = vunpack.c.l.b16 %v178
  %v595 = vunpack.c.l.b16 %v179
  %v596 = vunpack.c.l.b16 %v180
  %v597 = vunpack.c.l.b16 %v181
  %v598 = vunpack.c.l.b16 %v182
  %v599 = vunpack.c.l.b16 %v183
  %v600 = vunpack.c.l.b16 %v184
  %v601 = vunpack.c.l.b16 %v185
  %v602 = vunpack.c.l.b16 %v186
  %v603 = vunpack.c.l.b16 %v187
  %v604 = vunpack.c.l.b16 %v188
  %v605 = vunpack.c.l.b16 %v189
  %v606 = vunpack.c.l.b16 %v190
  %v607 = vunpack.c.l.b16 %v191
  %v608 = vunpack.c.l.b16 %v192
  %v609 = vpack.c.b16 %v482, %v481
  %v610 = vpack.c.b16 %v484, %v483
  %v611 = vpack.c.b16 %v486, %v485
  %v612 = vpack.c.b16 %v488, %v487
  %v613 = vpack.c.b16 %v490, %v489
  %v614 = vpack.c.b16 %v492, %v491
  %v615 = vpack.c.b16 %v494, %v493
  %v616 = vpack.c.b16 %v496, %v495
  %v617 = vpack.c.b16 %v498, %v497
  %v618 = vpack.c.b16 %v500, %v499
  %v619 = vpack.c.b16 %v502, %v501
  %v620 = vpack.c.b16 %v504, %v503
  %v621 = vpack.c.b16 %v506, %v505
  %v622 = vpack.c.b16 %v508, %v507
  %v623 = vpack.c.b16 %v510, %v509
  %v624 = vpack.c.b16 %v512, %v511
  %v625 = vpack.c.b16 %v514, %v513
  %v626 = vpack.c.b16 %v516, %v515
  %v627 = vpack.c.b16 %v518, %v517
  %v628 = vpack.c.b16 %v520, %v519
  %v629 = vpack.c.b16 %v522, %v521
  %v630 = vpack.c.b16 %v524, %v523
  %v631 = vpack.c.b16 %v526, %v525
  %v632 = vpack.c.b16 %v528, %v527
  %v633 = vpack.c.b16 %v530, %v529
  %v634 = vpack.c.b16 %v532, %v531
  %v635 = vpack.c.b16 %v534, %v533
  %v636 = vpack.c.b16 %v536, %v535
  %v637 = vpack.c.b16 %v538, %v537
  %v638 = vpack.c.b16 %v540, %v539
  %v639 = vpack.c.b16 %v542, %v541
  %v640 = vpack.c.b16 %v544, %v543
  %v641 = vpack.c.b16 %v546, %v545
  %v642 = vpack.c.b16 %v548, %v547
  %v643 = vpack.c.b16 %v550, %v549
  %v644 = vpack.c.b16 %v552, %v551
  %v645 = vpack.c.b16 %v554, %v553
  %v646 = vpack.c.b16 %v556, %v555
  %v647 = vpack.c.b16 %v558, %v557
  %v648 = vpack.c.b16 %v560, %v559
  %v649 = vpack.c.b16 %v562, %v561
  %v650 = vpack.c.b16 %v564, %v563
  %v651 = vpack.c.b16 %v566, %v565
  %v652 = vpack.c.b16 %v568, %v567
  %v653 = vpack.c.b16 %v570, %v569
  %v654 = vpack.c.b16 %v572, %v571
  %v655 = vpack.c.b16 %v574, %v573
  %v656 = vpack.c.b16 %v576, %v575
  %v657 = vpack.c.b16 %v578, %v577
  %v658 = vpack.c.b16 %v580, %v579
  %v659 = vpack.c.b16 %v582, %v581
  %v660 = vpack.c.b16 %v584, %v583
  %v661 = vpack.c.b16 %v586, %v585
  %v662 = vpack.c.b16 %v588, %v587
  %v663 = vpack.c.b16 %v590, %v589
  %v664 = vpack.c.b16 %v592, %v591
  %v665 = vpack.c.b16 %v594, %v593
  %v666 = vpack.c.b16 %v596, %v595
  %v667 = vpack.c.b16 %v598, %v597
  %v668 = vpack.c.b16 %v600, %v599
  %v669 = vpack.c.b16 %v602, %v601
  %v670 = vpack.c.b16 %v604, %v603
  %v671 = vpack.c.b16 %v606, %v605
  %v672 = vpack.c.b16 %v608, %v607
  %737 = vmatprep.subr.bf16.mxu0 0
  %738 = vmatpush1.bf16.msra.mxu0 %v609
  %739 = vmatprep.subr.bf16.mxu0 0
  %740 = vmatpush1.bf16.msra.mxu0 %v610
  %741 = vmatprep.subr.bf16.mxu0 0
  %742 = vmatpush1.bf16.msra.mxu0 %v611
  %743 = vmatprep.subr.bf16.mxu0 0
  %744 = vmatpush1.bf16.msra.mxu0 %v612
  %745 = vmatprep.subr.bf16.mxu0 0
  %746 = vmatpush1.bf16.msra.mxu0 %v613
  %747 = vmatprep.subr.bf16.mxu0 0
  %748 = vmatpush1.bf16.msra.mxu0 %v614
  %749 = vmatprep.subr.bf16.mxu0 0
  %750 = vmatpush1.bf16.msra.mxu0 %v615
  %751 = vmatprep.subr.bf16.mxu0 0
  %752 = vmatpush1.bf16.msra.mxu0 %v616
  %753 = vmatprep.subr.bf16.mxu0 0
  %754 = vmatpush1.bf16.msra.mxu0 %v617
  %755 = vmatprep.subr.bf16.mxu0 0
  %756 = vmatpush1.bf16.msra.mxu0 %v618
  %757 = vmatprep.subr.bf16.mxu0 0
  %758 = vmatpush1.bf16.msra.mxu0 %v619
  %759 = vmatprep.subr.bf16.mxu0 0
  %760 = vmatpush1.bf16.msra.mxu0 %v620
  %761 = vmatprep.subr.bf16.mxu0 0
  %762 = vmatpush1.bf16.msra.mxu0 %v621
  %763 = vmatprep.subr.bf16.mxu0 0
  %764 = vmatpush1.bf16.msra.mxu0 %v622
  %765 = vmatprep.subr.bf16.mxu0 0
  %766 = vmatpush1.bf16.msra.mxu0 %v623
  %767 = vmatprep.subr.bf16.mxu0 0
  %768 = vmatpush1.bf16.msra.mxu0 %v624
  %769 = vmatprep.mubr.bf16.mxu0 %v290
  %770 = vmatmul.mubr.bf16.gmra.mrb[0].mxu0 %v289
  %v771 = vpop.f32.mrb[0].mxu0
  %v772 = vadd.f32 0.0, %v771
  %v773 = vpop.f32.mrb[0].mxu0
  %v774 = vpop.f32.mrb[0].mxu0
  %v775 = vadd.f32 0.0, %v774
  %v776 = vpop.f32.mrb[0].mxu0
  %777 = vmatprep.mubr.bf16.mxu0 %v298
  %778 = vmatmul.mubr.bf16.gmra.mrb[0].mxu0 %v297
  %v779 = vpop.f32.mrb[0].mxu0
  %v780 = vadd.f32 0.0, %v779
  %v781 = vpop.f32.mrb[0].mxu0
  %v782 = vpop.f32.mrb[0].mxu0
  %v783 = vadd.f32 0.0, %v782
  %v784 = vpop.f32.mrb[0].mxu0
  %785 = vmatprep.mubr.bf16.mxu0 %v306
  %786 = vmatmul.mubr.bf16.gmra.mrb[0].mxu0 %v305
  %v787 = vpop.f32.mrb[0].mxu0
  %v788 = vadd.f32 0.0, %v787
  %v789 = vpop.f32.mrb[0].mxu0
  %v790 = vpop.f32.mrb[0].mxu0
  %v791 = vadd.f32 0.0, %v790
  %v792 = vpop.f32.mrb[0].mxu0
  %793 = vmatprep.mubr.bf16.mxu0 %v314
  %794 = vmatmul.mubr.bf16.gmra.mrb[0].mxu0 %v313
  %v795 = vpop.f32.mrb[0].mxu0
  %v796 = vadd.f32 0.0, %v795
  %v797 = vpop.f32.mrb[0].mxu0
  %v798 = vpop.f32.mrb[0].mxu0
  %v799 = vadd.f32 0.0, %v798
  %v800 = vpop.f32.mrb[0].mxu0
  %801 = vdwg.mxu0
  %802 = vmatprep.subr.bf16.mxu0 0
  %803 = vmatpush1.bf16.msra.mxu0 %v625
  %804 = vmatprep.subr.bf16.mxu0 0
  %805 = vmatpush1.bf16.msra.mxu0 %v626
  %806 = vmatprep.subr.bf16.mxu0 0
  %807 = vmatpush1.bf16.msra.mxu0 %v627
  %808 = vmatprep.subr.bf16.mxu0 0
  %809 = vmatpush1.bf16.msra.mxu0 %v628
  %810 = vmatprep.subr.bf16.mxu0 0
  %811 = vmatpush1.bf16.msra.mxu0 %v629
  %812 = vmatprep.subr.bf16.mxu0 0
  %813 = vmatpush1.bf16.msra.mxu0 %v630
  %814 = vmatprep.subr.bf16.mxu0 0
  %815 = vmatpush1.bf16.msra.mxu0 %v631
  %816 = vmatprep.subr.bf16.mxu0 0
  %817 = vmatpush1.bf16.msra.mxu0 %v632
  %818 = vmatprep.subr.bf16.mxu0 0
  %819 = vmatpush1.bf16.msra.mxu0 %v633
  %820 = vmatprep.subr.bf16.mxu0 0
  %821 = vmatpush1.bf16.msra.mxu0 %v634
  %822 = vmatprep.subr.bf16.mxu0 0
  %823 = vmatpush1.bf16.msra.mxu0 %v635
  %824 = vmatprep.subr.bf16.mxu0 0
  %825 = vmatpush1.bf16.msra.mxu0 %v636
  %826 = vmatprep.subr.bf16.mxu0 0
  %827 = vmatpush1.bf16.msra.mxu0 %v637
  %828 = vmatprep.subr.bf16.mxu0 0
  %829 = vmatpush1.bf16.msra.mxu0 %v638
  %830 = vmatprep.subr.bf16.mxu0 0
  %831 = vmatpush1.bf16.msra.mxu0 %v639
  %832 = vmatprep.subr.bf16.mxu0 0
  %833 = vmatpush1.bf16.msra.mxu0 %v640
  %834 = vmatprep.mubr.bf16.mxu0 %v292
  %835 = vmatmul.mubr.bf16.gmra.mrb[0].mxu0 %v291
  %v836 = vpop.f32.mrb[0].mxu0
  %v837 = vadd.f32 %v772, %v836
  %v838 = vpop.f32.mrb[0].mxu0
  %v839 = vpop.f32.mrb[0].mxu0
  %v840 = vadd.f32 %v775, %v839
  %v841 = vpop.f32.mrb[0].mxu0
  %842 = vmatprep.mubr.bf16.mxu0 %v300
  %843 = vmatmul.mubr.bf16.gmra.mrb[0].mxu0 %v299
  %v844 = vpop.f32.mrb[0].mxu0
  %v845 = vadd.f32 %v780, %v844
  %v846 = vpop.f32.mrb[0].mxu0
  %v847 = vpop.f32.mrb[0].mxu0
  %v848 = vadd.f32 %v783, %v847
  %v849 = vpop.f32.mrb[0].mxu0
  %850 = vmatprep.mubr.bf16.mxu0 %v308
  %851 = vmatmul.mubr.bf16.gmra.mrb[0].mxu0 %v307
  %v852 = vpop.f32.mrb[0].mxu0
  %v853 = vadd.f32 %v788, %v852
  %v854 = vpop.f32.mrb[0].mxu0
  %v855 = vpop.f32.mrb[0].mxu0
  %v856 = vadd.f32 %v791, %v855
  %v857 = vpop.f32.mrb[0].mxu0
  %858 = vmatprep.mubr.bf16.mxu0 %v316
  %859 = vmatmul.mubr.bf16.gmra.mrb[0].mxu0 %v315
  %v860 = vpop.f32.mrb[0].mxu0
  %v861 = vadd.f32 %v796, %v860
  %v862 = vpop.f32.mrb[0].mxu0
  %v863 = vpop.f32.mrb[0].mxu0
  %v864 = vadd.f32 %v799, %v863
  %v865 = vpop.f32.mrb[0].mxu0
  %866 = vdwg.mxu0
  %867 = vmatprep.subr.bf16.mxu0 0
  %868 = vmatpush1.bf16.msra.mxu0 %v641
  %869 = vmatprep.subr.bf16.mxu0 0
  %870 = vmatpush1.bf16.msra.mxu0 %v642
  %871 = vmatprep.subr.bf16.mxu0 0
  %872 = vmatpush1.bf16.msra.mxu0 %v643
  %873 = vmatprep.subr.bf16.mxu0 0
  %874 = vmatpush1.bf16.msra.mxu0 %v644
  %875 = vmatprep.subr.bf16.mxu0 0
  %876 = vmatpush1.bf16.msra.mxu0 %v645
  %877 = vmatprep.subr.bf16.mxu0 0
  %878 = vmatpush1.bf16.msra.mxu0 %v646
  %879 = vmatprep.subr.bf16.mxu0 0
  %880 = vmatpush1.bf16.msra.mxu0 %v647
  %881 = vmatprep.subr.bf16.mxu0 0
  %882 = vmatpush1.bf16.msra.mxu0 %v648
  %883 = vmatprep.subr.bf16.mxu0 0
  %884 = vmatpush1.bf16.msra.mxu0 %v649
  %885 = vmatprep.subr.bf16.mxu0 0
  %886 = vmatpush1.bf16.msra.mxu0 %v650
  %887 = vmatprep.subr.bf16.mxu0 0
  %888 = vmatpush1.bf16.msra.mxu0 %v651
  %889 = vmatprep.subr.bf16.mxu0 0
  %890 = vmatpush1.bf16.msra.mxu0 %v652
  %891 = vmatprep.subr.bf16.mxu0 0
  %892 = vmatpush1.bf16.msra.mxu0 %v653
  %893 = vmatprep.subr.bf16.mxu0 0
  %894 = vmatpush1.bf16.msra.mxu0 %v654
  %895 = vmatprep.subr.bf16.mxu0 0
  %896 = vmatpush1.bf16.msra.mxu0 %v655
  %897 = vmatprep.subr.bf16.mxu0 0
  %898 = vmatpush1.bf16.msra.mxu0 %v656
  %899 = vmatprep.mubr.bf16.mxu0 %v294
  %900 = vmatmul.mubr.bf16.gmra.mrb[0].mxu0 %v293
  %v901 = vpop.f32.mrb[0].mxu0
  %v902 = vadd.f32 %v837, %v901
  %v903 = vpop.f32.mrb[0].mxu0
  %v904 = vpop.f32.mrb[0].mxu0
  %v905 = vadd.f32 %v840, %v904
  %v906 = vpop.f32.mrb[0].mxu0
  %907 = vmatprep.mubr.bf16.mxu0 %v302
  %908 = vmatmul.mubr.bf16.gmra.mrb[0].mxu0 %v301
  %v909 = vpop.f32.mrb[0].mxu0
  %v910 = vadd.f32 %v845, %v909
  %v911 = vpop.f32.mrb[0].mxu0
  %v912 = vpop.f32.mrb[0].mxu0
  %v913 = vadd.f32 %v848, %v912
  %v914 = vpop.f32.mrb[0].mxu0
  %915 = vmatprep.mubr.bf16.mxu0 %v310
  %916 = vmatmul.mubr.bf16.gmra.mrb[0].mxu0 %v309
  %v917 = vpop.f32.mrb[0].mxu0
  %v918 = vadd.f32 %v853, %v917
  %v919 = vpop.f32.mrb[0].mxu0
  %v920 = vpop.f32.mrb[0].mxu0
  %v921 = vadd.f32 %v856, %v920
  %v922 = vpop.f32.mrb[0].mxu0
  %923 = vmatprep.mubr.bf16.mxu0 %v318
  %924 = vmatmul.mubr.bf16.gmra.mrb[0].mxu0 %v317
  %v925 = vpop.f32.mrb[0].mxu0
  %v926 = vadd.f32 %v861, %v925
  %v927 = vpop.f32.mrb[0].mxu0
  %v928 = vpop.f32.mrb[0].mxu0
  %v929 = vadd.f32 %v864, %v928
  %v930 = vpop.f32.mrb[0].mxu0
  %931 = vdwg.mxu0
  %932 = vmatprep.subr.bf16.mxu0 0
  %933 = vmatpush1.bf16.msra.mxu0 %v657
  %934 = vmatprep.subr.bf16.mxu0 0
  %935 = vmatpush1.bf16.msra.mxu0 %v658
  %936 = vmatprep.subr.bf16.mxu0 0
  %937 = vmatpush1.bf16.msra.mxu0 %v659
  %938 = vmatprep.subr.bf16.mxu0 0
  %939 = vmatpush1.bf16.msra.mxu0 %v660
  %940 = vmatprep.subr.bf16.mxu0 0
  %941 = vmatpush1.bf16.msra.mxu0 %v661
  %942 = vmatprep.subr.bf16.mxu0 0
  %943 = vmatpush1.bf16.msra.mxu0 %v662
  %944 = vmatprep.subr.bf16.mxu0 0
  %945 = vmatpush1.bf16.msra.mxu0 %v663
  %946 = vmatprep.subr.bf16.mxu0 0
  %947 = vmatpush1.bf16.msra.mxu0 %v664
  %948 = vmatprep.subr.bf16.mxu0 0
  %949 = vmatpush1.bf16.msra.mxu0 %v665
  %950 = vmatprep.subr.bf16.mxu0 0
  %951 = vmatpush1.bf16.msra.mxu0 %v666
  %952 = vmatprep.subr.bf16.mxu0 0
  %953 = vmatpush1.bf16.msra.mxu0 %v667
  %954 = vmatprep.subr.bf16.mxu0 0
  %955 = vmatpush1.bf16.msra.mxu0 %v668
  %956 = vmatprep.subr.bf16.mxu0 0
  %957 = vmatpush1.bf16.msra.mxu0 %v669
  %958 = vmatprep.subr.bf16.mxu0 0
  %959 = vmatpush1.bf16.msra.mxu0 %v670
  %960 = vmatprep.subr.bf16.mxu0 0
  %961 = vmatpush1.bf16.msra.mxu0 %v671
  %962 = vmatprep.subr.bf16.mxu0 0
  %963 = vmatpush1.bf16.msra.mxu0 %v672
  %964 = vmatprep.mubr.bf16.mxu0 %v296
  %965 = vmatmul.mubr.bf16.gmra.mrb[0].mxu0 %v295
  %v966 = vpop.f32.mrb[0].mxu0
  %v967 = vadd.f32 %v902, %v966
  %v968 = vpop.f32.mrb[0].mxu0
  %v969 = vpop.f32.mrb[0].mxu0
  %v970 = vadd.f32 %v905, %v969
  %v971 = vpop.f32.mrb[0].mxu0
  %972 = vmatprep.mubr.bf16.mxu0 %v304
  %973 = vmatmul.mubr.bf16.gmra.mrb[0].mxu0 %v303
  %v974 = vpop.f32.mrb[0].mxu0
  %v975 = vadd.f32 %v910, %v974
  %v976 = vpop.f32.mrb[0].mxu0
  %v977 = vpop.f32.mrb[0].mxu0
  %v978 = vadd.f32 %v913, %v977
  %v979 = vpop.f32.mrb[0].mxu0
  %980 = vmatprep.mubr.bf16.mxu0 %v312
  %981 = vmatmul.mubr.bf16.gmra.mrb[0].mxu0 %v311
  %v982 = vpop.f32.mrb[0].mxu0
  %v983 = vadd.f32 %v918, %v982
  %v984 = vpop.f32.mrb[0].mxu0
  %v985 = vpop.f32.mrb[0].mxu0
  %v986 = vadd.f32 %v921, %v985
  %v987 = vpop.f32.mrb[0].mxu0
  %988 = vmatprep.mubr.bf16.mxu0 %v320
  %989 = vmatmul.mubr.bf16.gmra.mrb[0].mxu0 %v319
  %v990 = vpop.f32.mrb[0].mxu0
  %v991 = vadd.f32 %v926, %v990
  %v992 = vpop.f32.mrb[0].mxu0
  %v993 = vpop.f32.mrb[0].mxu0
  %v994 = vadd.f32 %v929, %v993
  %v995 = vpop.f32.mrb[0].mxu0
  %996 = vdwg.mxu0
  %vm997 = vcmp.ge.f32.partialorder %v967, 0.0
  %vm998 = vcmp.ge.f32.partialorder %v970, 0.0
  %vm999 = vcmp.ge.f32.partialorder %v975, 0.0
  %vm1000 = vcmp.ge.f32.partialorder %v978, 0.0
  %vm1001 = vcmp.ge.f32.partialorder %v983, 0.0
  %vm1002 = vcmp.ge.f32.partialorder %v986, 0.0
  %vm1003 = vcmp.ge.f32.partialorder %v991, 0.0
  %vm1004 = vcmp.ge.f32.partialorder %v994, 0.0
  %v1005 = vmul.f32 %v967, 0.01
  %v1006 = vmul.f32 %v970, 0.01
  %v1007 = vmul.f32 %v975, 0.01
  %v1008 = vmul.f32 %v978, 0.01
  %v1009 = vmul.f32 %v983, 0.01
  %v1010 = vmul.f32 %v986, 0.01
  %v1011 = vmul.f32 %v991, 0.01
  %v1012 = vmul.f32 %v994, 0.01
  %v1013 = vsel %vm997, %v967, %v1005
  %v1014 = vsel %vm998, %v970, %v1006
  %v1015 = vsel %vm999, %v975, %v1007
  %v1016 = vsel %vm1000, %v978, %v1008
  %v1017 = vsel %vm1001, %v983, %v1009
  %v1018 = vsel %vm1002, %v986, %v1010
  %v1019 = vsel %vm1003, %v991, %v1011
  %v1020 = vsel %vm1004, %v994, %v1012
  %1021 = vst [vmem:[%s10] sm:$0xff] %v1013
  %1022 = vst [vmem:[%s10 + $0x8] sm:$0xff] %v1014
  %1023 = vst [vmem:[%s10 + $0x10] sm:$0xff] %v1015
  %1024 = vst [vmem:[%s10 + $0x18] sm:$0xff] %v1016
  %1025 = vst [vmem:[%s10 + $0x20] sm:$0xff] %v1017
  %1026 = vst [vmem:[%s10 + $0x28] sm:$0xff] %v1018
  %1027 = vst [vmem:[%s10 + $0x30] sm:$0xff] %v1019
  %1028 = vst [vmem:[%s10 + $0x38] sm:$0xff] %v1020
  %v1029 = vpack.c.bf16 %v1014, %v1013
  %v1030 = vpack.c.bf16 %v1016, %v1015
  %v1031 = vpack.c.bf16 %v1018, %v1017
  %v1032 = vpack.c.bf16 %v1020, %v1019
  %v1033 = vld [vmem:[%s2] sm:$0xf]
  %v1034 = vld [vmem:[%s2 + $0x4] sm:$0xf]
  %v1035 = vld [vmem:[%s2 + $0x8] sm:$0xf]
  %v1036 = vld [vmem:[%s2 + $0xc] sm:$0xf]
  %v1037 = vld [vmem:[%s2 + $0x10] sm:$0xf]
  %v1038 = vld [vmem:[%s2 + $0x14] sm:$0xf]
  %v1039 = vld [vmem:[%s2 + $0x18] sm:$0xf]
  %v1040 = vld [vmem:[%s2 + $0x1c] sm:$0xf]
  %v1041 = vld [vmem:[%s2 + $0x20] sm:$0xf]
  %v1042 = vld [vmem:[%s2 + $0x24] sm:$0xf]
  %v1043 = vld [vmem:[%s2 + $0x28] sm:$0xf]
  %v1044 = vld [vmem:[%s2 + $0x2c] sm:$0xf]
  %v1045 = vld [vmem:[%s2 + $0x30] sm:$0xf]
  %v1046 = vld [vmem:[%s2 + $0x34] sm:$0xf]
  %v1047 = vld [vmem:[%s2 + $0x38] sm:$0xf]
  %v1048 = vld [vmem:[%s2 + $0x3c] sm:$0xf]
  %v1065 = vunpack.c.l.b16 %v1033
  %v1066 = vunpack.c.l.b16 %v1034
  %v1067 = vunpack.c.l.b16 %v1035
  %v1068 = vunpack.c.l.b16 %v1036
  %v1069 = vunpack.c.l.b16 %v1037
  %v1070 = vunpack.c.l.b16 %v1038
  %v1071 = vunpack.c.l.b16 %v1039
  %v1072 = vunpack.c.l.b16 %v1040
  %v1073 = vunpack.c.l.b16 %v1041
  %v1074 = vunpack.c.l.b16 %v1042
  %v1075 = vunpack.c.l.b16 %v1043
  %v1076 = vunpack.c.l.b16 %v1044
  %v1077 = vunpack.c.l.b16 %v1045
  %v1078 = vunpack.c.l.b16 %v1046
  %v1079 = vunpack.c.l.b16 %v1047
  %v1080 = vunpack.c.l.b16 %v1048
  %v1081 = vpack.c.b16 %v1066, %v1065
  %v1082 = vpack.c.b16 %v1068, %v1067
  %v1083 = vpack.c.b16 %v1070, %v1069
  %v1084 = vpack.c.b16 %v1072, %v1071
  %v1085 = vpack.c.b16 %v1074, %v1073
  %v1086 = vpack.c.b16 %v1076, %v1075
  %v1087 = vpack.c.b16 %v1078, %v1077
  %v1088 = vpack.c.b16 %v1080, %v1079
  %1097 = vmatprep.subr.bf16.mxu0 0
  %1098 = vmatpush1.bf16.msra.mxu0 %v1081
  %1099 = vmatprep.subr.bf16.mxu0 0
  %1100 = vmatpush1.bf16.msra.mxu0 %v1082
  %1101 = vmatprep.subr.bf16.mxu0 0
  %1102 = vmatpush1.bf16.msra.mxu0 %v1083
  %1103 = vmatprep.subr.bf16.mxu0 0
  %1104 = vmatpush1.bf16.msra.mxu0 %v1084
  %1105 = vmatprep.subr.bf16.mxu0 0
  %1106 = vmatpush1.bf16.msra.mxu0 %v1085
  %1107 = vmatprep.subr.bf16.mxu0 0
  %1108 = vmatpush1.bf16.msra.mxu0 %v1086
  %1109 = vmatprep.subr.bf16.mxu0 0
  %1110 = vmatpush1.bf16.msra.mxu0 %v1087
  %1111 = vmatprep.subr.bf16.mxu0 0
  %1112 = vmatpush1.bf16.msra.mxu0 %v1088
  %1113 = vmatprep.subr.bf16.mxu0 0
  %1114 = vmatpush1.bf16.msra.mxu0 0
  %1115 = vmatprep.subr.bf16.mxu0 0
  %1116 = vmatpush1.bf16.msra.mxu0 0
  %1117 = vmatprep.subr.bf16.mxu0 0
  %1118 = vmatpush1.bf16.msra.mxu0 0
  %1119 = vmatprep.subr.bf16.mxu0 0
  %1120 = vmatpush1.bf16.msra.mxu0 0
  %1121 = vmatprep.subr.bf16.mxu0 0
  %1122 = vmatpush1.bf16.msra.mxu0 0
  %1123 = vmatprep.subr.bf16.mxu0 0
  %1124 = vmatpush1.bf16.msra.mxu0 0
  %1125 = vmatprep.subr.bf16.mxu0 0
  %1126 = vmatpush1.bf16.msra.mxu0 0
  %1127 = vmatprep.subr.bf16.mxu0 0
  %1128 = vmatpush1.bf16.msra.mxu0 0
  %1129 = vmatprep.mubr.bf16.mxu0 0
  %1130 = vmatmul.mubr.bf16.gmra.mrb[0].mxu0 %v1029
  %v1131 = vpop.f32.mrb[0].mxu0
  %v1132 = vadd.f32 0.0, %v1131
  %v1133 = vpop.f32.mrb[0].mxu0
  %v1134 = vpop.f32.mrb[0].mxu0
  %v1135 = vadd.f32 0.0, %v1134
  %v1136 = vpop.f32.mrb[0].mxu0
  %1137 = vmatprep.mubr.bf16.mxu0 0
  %1138 = vmatmul.mubr.bf16.gmra.mrb[0].mxu0 %v1030
  %v1139 = vpop.f32.mrb[0].mxu0
  %v1140 = vadd.f32 0.0, %v1139
  %v1141 = vpop.f32.mrb[0].mxu0
  %v1142 = vpop.f32.mrb[0].mxu0
  %v1143 = vadd.f32 0.0, %v1142
  %v1144 = vpop.f32.mrb[0].mxu0
  %1145 = vmatprep.mubr.bf16.mxu0 0
  %1146 = vmatmul.mubr.bf16.gmra.mrb[0].mxu0 %v1031
  %v1147 = vpop.f32.mrb[0].mxu0
  %v1148 = vadd.f32 0.0, %v1147
  %v1149 = vpop.f32.mrb[0].mxu0
  %v1150 = vpop.f32.mrb[0].mxu0
  %v1151 = vadd.f32 0.0, %v1150
  %v1152 = vpop.f32.mrb[0].mxu0
  %1153 = vmatprep.mubr.bf16.mxu0 0
  %1154 = vmatmul.mubr.bf16.gmra.mrb[0].mxu0 %v1032
  %v1155 = vpop.f32.mrb[0].mxu0
  %v1156 = vadd.f32 0.0, %v1155
  %v1157 = vpop.f32.mrb[0].mxu0
  %v1158 = vpop.f32.mrb[0].mxu0
  %v1159 = vadd.f32 0.0, %v1158
  %v1160 = vpop.f32.mrb[0].mxu0
  %1161 = vdwg.mxu0
  %vm1162 = vcmp.ge.f32.partialorder %v1132, 0.0
  %vm1163 = vcmp.ge.f32.partialorder %v1135, 0.0
  %vm1164 = vcmp.ge.f32.partialorder %v1140, 0.0
  %vm1165 = vcmp.ge.f32.partialorder %v1143, 0.0
  %vm1166 = vcmp.ge.f32.partialorder %v1148, 0.0
  %vm1167 = vcmp.ge.f32.partialorder %v1151, 0.0
  %vm1168 = vcmp.ge.f32.partialorder %v1156, 0.0
  %vm1169 = vcmp.ge.f32.partialorder %v1159, 0.0
  %v1170 = vmul.f32 %v1132, 0.01
  %v1171 = vmul.f32 %v1135, 0.01
  %v1172 = vmul.f32 %v1140, 0.01
  %v1173 = vmul.f32 %v1143, 0.01
  %v1174 = vmul.f32 %v1148, 0.01
  %v1175 = vmul.f32 %v1151, 0.01
  %v1176 = vmul.f32 %v1156, 0.01
  %v1177 = vmul.f32 %v1159, 0.01
  %v1178 = vsel %vm1162, %v1132, %v1170
  %v1179 = vsel %vm1163, %v1135, %v1171
  %v1180 = vsel %vm1164, %v1140, %v1172
  %v1181 = vsel %vm1165, %v1143, %v1173
  %v1182 = vsel %vm1166, %v1148, %v1174
  %v1183 = vsel %vm1167, %v1151, %v1175
  %v1184 = vsel %vm1168, %v1156, %v1176
  %v1185 = vsel %vm1169, %v1159, %v1177
  %v1186 = vpack.c.bf16 %v1179, %v1178
  %v1187 = vpack.c.bf16 %v1181, %v1180
  %v1188 = vpack.c.bf16 %v1183, %v1182
  %v1189 = vpack.c.bf16 %v1185, %v1184
  %v1190 = vld [vmem:[%s3] sm:$0xf]
  %v1191 = vld [vmem:[%s3 + $0x4] sm:$0xf]
  %v1192 = vld [vmem:[%s3 + $0x8] sm:$0xf]
  %v1193 = vld [vmem:[%s3 + $0xc] sm:$0xf]
  %v1194 = vld [vmem:[%s3 + $0x10] sm:$0xf]
  %v1195 = vld [vmem:[%s3 + $0x14] sm:$0xf]
  %v1196 = vld [vmem:[%s3 + $0x18] sm:$0xf]
  %v1197 = vld [vmem:[%s3 + $0x1c] sm:$0xf]
  %v1198 = vld [vmem:[%s3 + $0x20] sm:$0xf]
  %v1199 = vld [vmem:[%s3 + $0x24] sm:$0xf]
  %v1200 = vld [vmem:[%s3 + $0x28] sm:$0xf]
  %v1201 = vld [vmem:[%s3 + $0x2c] sm:$0xf]
  %v1202 = vld [vmem:[%s3 + $0x30] sm:$0xf]
  %v1203 = vld [vmem:[%s3 + $0x34] sm:$0xf]
  %v1204 = vld [vmem:[%s3 + $0x38] sm:$0xf]
  %v1205 = vld [vmem:[%s3 + $0x3c] sm:$0xf]
  %v1222 = vunpack.c.l.b16 %v1190
  %v1223 = vunpack.c.l.b16 %v1191
  %v1224 = vunpack.c.l.b16 %v1192
  %v1225 = vunpack.c.l.b16 %v1193
  %v1226 = vunpack.c.l.b16 %v1194
  %v1227 = vunpack.c.l.b16 %v1195
  %v1228 = vunpack.c.l.b16 %v1196
  %v1229 = vunpack.c.l.b16 %v1197
  %v1230 = vunpack.c.l.b16 %v1198
  %v1231 = vunpack.c.l.b16 %v1199
  %v1232 = vunpack.c.l.b16 %v1200
  %v1233 = vunpack.c.l.b16 %v1201
  %v1234 = vunpack.c.l.b16 %v1202
  %v1235 = vunpack.c.l.b16 %v1203
  %v1236 = vunpack.c.l.b16 %v1204
  %v1237 = vunpack.c.l.b16 %v1205
  %v1238 = vpack.c.b16 %v1223, %v1222
  %v1239 = vpack.c.b16 %v1225, %v1224
  %v1240 = vpack.c.b16 %v1227, %v1226
  %v1241 = vpack.c.b16 %v1229, %v1228
  %v1242 = vpack.c.b16 %v1231, %v1230
  %v1243 = vpack.c.b16 %v1233, %v1232
  %v1244 = vpack.c.b16 %v1235, %v1234
  %v1245 = vpack.c.b16 %v1237, %v1236
  %1254 = vmatprep.subr.bf16.mxu0 0
  %1255 = vmatpush1.bf16.msra.mxu0 %v1238
  %1256 = vmatprep.subr.bf16.mxu0 0
  %1257 = vmatpush1.bf16.msra.mxu0 %v1239
  %1258 = vmatprep.subr.bf16.mxu0 0
  %1259 = vmatpush1.bf16.msra.mxu0 %v1240
  %1260 = vmatprep.subr.bf16.mxu0 0
  %1261 = vmatpush1.bf16.msra.mxu0 %v1241
  %1262 = vmatprep.subr.bf16.mxu0 0
  %1263 = vmatpush1.bf16.msra.mxu0 %v1242
  %1264 = vmatprep.subr.bf16.mxu0 0
  %1265 = vmatpush1.bf16.msra.mxu0 %v1243
  %1266 = vmatprep.subr.bf16.mxu0 0
  %1267 = vmatpush1.bf16.msra.mxu0 %v1244
  %1268 = vmatprep.subr.bf16.mxu0 0
  %1269 = vmatpush1.bf16.msra.mxu0 %v1245
  %1270 = vmatprep.subr.bf16.mxu0 0
  %1271 = vmatpush1.bf16.msra.mxu0 0
  %1272 = vmatprep.subr.bf16.mxu0 0
  %1273 = vmatpush1.bf16.msra.mxu0 0
  %1274 = vmatprep.subr.bf16.mxu0 0
  %1275 = vmatpush1.bf16.msra.mxu0 0
  %1276 = vmatprep.subr.bf16.mxu0 0
  %1277 = vmatpush1.bf16.msra.mxu0 0
  %1278 = vmatprep.subr.bf16.mxu0 0
  %1279 = vmatpush1.bf16.msra.mxu0 0
  %1280 = vmatprep.subr.bf16.mxu0 0
  %1281 = vmatpush1.bf16.msra.mxu0 0
  %1282 = vmatprep.subr.bf16.mxu0 0
  %1283 = vmatpush1.bf16.msra.mxu0 0
  %1284 = vmatprep.subr.bf16.mxu0 0
  %1285 = vmatpush1.bf16.msra.mxu0 0
  %1286 = vmatprep.mubr.bf16.mxu0 0
  %1287 = vmatmul.mubr.bf16.gmra.mrb[0].mxu0 %v1186
  %v1288 = vpop.f32.mrb[0].mxu0
  %v1289 = vadd.f32 0.0, %v1288
  %v1290 = vpop.f32.mrb[0].mxu0
  %v1291 = vpop.f32.mrb[0].mxu0
  %v1292 = vadd.f32 0.0, %v1291
  %v1293 = vpop.f32.mrb[0].mxu0
  %1294 = vmatprep.mubr.bf16.mxu0 0
  %1295 = vmatmul.mubr.bf16.gmra.mrb[0].mxu0 %v1187
  %v1296 = vpop.f32.mrb[0].mxu0
  %v1297 = vadd.f32 0.0, %v1296
  %v1298 = vpop.f32.mrb[0].mxu0
  %v1299 = vpop.f32.mrb[0].mxu0
  %v1300 = vadd.f32 0.0, %v1299
  %v1301 = vpop.f32.mrb[0].mxu0
  %1302 = vmatprep.mubr.bf16.mxu0 0
  %1303 = vmatmul.mubr.bf16.gmra.mrb[0].mxu0 %v1188
  %v1304 = vpop.f32.mrb[0].mxu0
  %v1305 = vadd.f32 0.0, %v1304
  %v1306 = vpop.f32.mrb[0].mxu0
  %v1307 = vpop.f32.mrb[0].mxu0
  %v1308 = vadd.f32 0.0, %v1307
  %v1309 = vpop.f32.mrb[0].mxu0
  %1310 = vmatprep.mubr.bf16.mxu0 0
  %1311 = vmatmul.mubr.bf16.gmra.mrb[0].mxu0 %v1189
  %v1312 = vpop.f32.mrb[0].mxu0
  %v1313 = vadd.f32 0.0, %v1312
  %v1314 = vpop.f32.mrb[0].mxu0
  %v1315 = vpop.f32.mrb[0].mxu0
  %v1316 = vadd.f32 0.0, %v1315
  %v1317 = vpop.f32.mrb[0].mxu0
  %1318 = vdwg.mxu0
  %vm1319 = vcmp.ge.f32.partialorder %v1289, 0.0
  %vm1320 = vcmp.ge.f32.partialorder %v1292, 0.0
  %vm1321 = vcmp.ge.f32.partialorder %v1297, 0.0
  %vm1322 = vcmp.ge.f32.partialorder %v1300, 0.0
  %vm1323 = vcmp.ge.f32.partialorder %v1305, 0.0
  %vm1324 = vcmp.ge.f32.partialorder %v1308, 0.0
  %vm1325 = vcmp.ge.f32.partialorder %v1313, 0.0
  %vm1326 = vcmp.ge.f32.partialorder %v1316, 0.0
  %v1327 = vmul.f32 %v1289, 0.01
  %v1328 = vmul.f32 %v1292, 0.01
  %v1329 = vmul.f32 %v1297, 0.01
  %v1330 = vmul.f32 %v1300, 0.01
  %v1331 = vmul.f32 %v1305, 0.01
  %v1332 = vmul.f32 %v1308, 0.01
  %v1333 = vmul.f32 %v1313, 0.01
  %v1334 = vmul.f32 %v1316, 0.01
  %v1335 = vsel %vm1319, %v1289, %v1327
  %v1336 = vsel %vm1320, %v1292, %v1328
  %v1337 = vsel %vm1321, %v1297, %v1329
  %v1338 = vsel %vm1322, %v1300, %v1330
  %v1339 = vsel %vm1323, %v1305, %v1331
  %v1340 = vsel %vm1324, %v1308, %v1332
  %v1341 = vsel %vm1325, %v1313, %v1333
  %v1342 = vsel %vm1326, %v1316, %v1334
  %v1343 = vpack.c.bf16 %v1336, %v1335
  %v1344 = vpack.c.bf16 %v1338, %v1337
  %v1345 = vpack.c.bf16 %v1340, %v1339
  %v1346 = vpack.c.bf16 %v1342, %v1341
  %v1347 = vld [vmem:[%s4] sm:$0xf]
  %v1348 = vld [vmem:[%s4 + $0x4] sm:$0xf]
  %v1349 = vld [vmem:[%s4 + $0x8] sm:$0xf]
  %v1350 = vld [vmem:[%s4 + $0xc] sm:$0xf]
  %v1351 = vld [vmem:[%s4 + $0x10] sm:$0xf]
  %v1352 = vld [vmem:[%s4 + $0x14] sm:$0xf]
  %v1353 = vld [vmem:[%s4 + $0x18] sm:$0xf]
  %v1354 = vld [vmem:[%s4 + $0x1c] sm:$0xf]
  %v1355 = vld [vmem:[%s4 + $0x20] sm:$0xf]
  %v1356 = vld [vmem:[%s4 + $0x24] sm:$0xf]
  %v1357 = vld [vmem:[%s4 + $0x28] sm:$0xf]
  %v1358 = vld [vmem:[%s4 + $0x2c] sm:$0xf]
  %v1359 = vld [vmem:[%s4 + $0x30] sm:$0xf]
  %v1360 = vld [vmem:[%s4 + $0x34] sm:$0xf]
  %v1361 = vld [vmem:[%s4 + $0x38] sm:$0xf]
  %v1362 = vld [vmem:[%s4 + $0x3c] sm:$0xf]
  %v1379 = vunpack.c.l.b16 %v1347
  %v1380 = vunpack.c.l.b16 %v1348
  %v1381 = vunpack.c.l.b16 %v1349
  %v1382 = vunpack.c.l.b16 %v1350
  %v1383 = vunpack.c.l.b16 %v1351
  %v1384 = vunpack.c.l.b16 %v1352
  %v1385 = vunpack.c.l.b16 %v1353
  %v1386 = vunpack.c.l.b16 %v1354
  %v1387 = vunpack.c.l.b16 %v1355
  %v1388 = vunpack.c.l.b16 %v1356
  %v1389 = vunpack.c.l.b16 %v1357
  %v1390 = vunpack.c.l.b16 %v1358
  %v1391 = vunpack.c.l.b16 %v1359
  %v1392 = vunpack.c.l.b16 %v1360
  %v1393 = vunpack.c.l.b16 %v1361
  %v1394 = vunpack.c.l.b16 %v1362
  %v1395 = vpack.c.b16 %v1380, %v1379
  %v1396 = vpack.c.b16 %v1382, %v1381
  %v1397 = vpack.c.b16 %v1384, %v1383
  %v1398 = vpack.c.b16 %v1386, %v1385
  %v1399 = vpack.c.b16 %v1388, %v1387
  %v1400 = vpack.c.b16 %v1390, %v1389
  %v1401 = vpack.c.b16 %v1392, %v1391
  %v1402 = vpack.c.b16 %v1394, %v1393
  %1411 = vmatprep.subr.bf16.mxu0 0
  %1412 = vmatpush1.bf16.msra.mxu0 %v1395
  %1413 = vmatprep.subr.bf16.mxu0 0
  %1414 = vmatpush1.bf16.msra.mxu0 %v1396
  %1415 = vmatprep.subr.bf16.mxu0 0
  %1416 = vmatpush1.bf16.msra.mxu0 %v1397
  %1417 = vmatprep.subr.bf16.mxu0 0
  %1418 = vmatpush1.bf16.msra.mxu0 %v1398
  %1419 = vmatprep.subr.bf16.mxu0 0
  %1420 = vmatpush1.bf16.msra.mxu0 %v1399
  %1421 = vmatprep.subr.bf16.mxu0 0
  %1422 = vmatpush1.bf16.msra.mxu0 %v1400
  %1423 = vmatprep.subr.bf16.mxu0 0
  %1424 = vmatpush1.bf16.msra.mxu0 %v1401
  %1425 = vmatprep.subr.bf16.mxu0 0
  %1426 = vmatpush1.bf16.msra.mxu0 %v1402
  %1427 = vmatprep.subr.bf16.mxu0 0
  %1428 = vmatpush1.bf16.msra.mxu0 0
  %1429 = vmatprep.subr.bf16.mxu0 0
  %1430 = vmatpush1.bf16.msra.mxu0 0
  %1431 = vmatprep.subr.bf16.mxu0 0
  %1432 = vmatpush1.bf16.msra.mxu0 0
  %1433 = vmatprep.subr.bf16.mxu0 0
  %1434 = vmatpush1.bf16.msra.mxu0 0
  %1435 = vmatprep.subr.bf16.mxu0 0
  %1436 = vmatpush1.bf16.msra.mxu0 0
  %1437 = vmatprep.subr.bf16.mxu0 0
  %1438 = vmatpush1.bf16.msra.mxu0 0
  %1439 = vmatprep.subr.bf16.mxu0 0
  %1440 = vmatpush1.bf16.msra.mxu0 0
  %1441 = vmatprep.subr.bf16.mxu0 0
  %1442 = vmatpush1.bf16.msra.mxu0 0
  %1443 = vmatprep.mubr.bf16.mxu0 0
  %1444 = vmatmul.mubr.bf16.gmra.mrb[0].mxu0 %v1343
  %v1445 = vpop.f32.mrb[0].mxu0
  %v1446 = vadd.f32 0.0, %v1445
  %v1447 = vpop.f32.mrb[0].mxu0
  %v1448 = vpop.f32.mrb[0].mxu0
  %v1449 = vadd.f32 0.0, %v1448
  %v1450 = vpop.f32.mrb[0].mxu0
  %1451 = vmatprep.mubr.bf16.mxu0 0
  %1452 = vmatmul.mubr.bf16.gmra.mrb[0].mxu0 %v1344
  %v1453 = vpop.f32.mrb[0].mxu0
  %v1454 = vadd.f32 0.0, %v1453
  %v1455 = vpop.f32.mrb[0].mxu0
  %v1456 = vpop.f32.mrb[0].mxu0
  %v1457 = vadd.f32 0.0, %v1456
  %v1458 = vpop.f32.mrb[0].mxu0
  %1459 = vmatprep.mubr.bf16.mxu0 0
  %1460 = vmatmul.mubr.bf16.gmra.mrb[0].mxu0 %v1345
  %v1461 = vpop.f32.mrb[0].mxu0
  %v1462 = vadd.f32 0.0, %v1461
  %v1463 = vpop.f32.mrb[0].mxu0
  %v1464 = vpop.f32.mrb[0].mxu0
  %v1465 = vadd.f32 0.0, %v1464
  %v1466 = vpop.f32.mrb[0].mxu0
  %1467 = vmatprep.mubr.bf16.mxu0 0
  %1468 = vmatmul.mubr.bf16.gmra.mrb[0].mxu0 %v1346
  %v1469 = vpop.f32.mrb[0].mxu0
  %v1470 = vadd.f32 0.0, %v1469
  %v1471 = vpop.f32.mrb[0].mxu0
  %v1472 = vpop.f32.mrb[0].mxu0
  %v1473 = vadd.f32 0.0, %v1472
  %v1474 = vpop.f32.mrb[0].mxu0
  %1475 = vdwg.mxu0
  %vm1476 = vcmp.ge.f32.partialorder %v1446, 0.0
  %vm1477 = vcmp.ge.f32.partialorder %v1449, 0.0
  %vm1478 = vcmp.ge.f32.partialorder %v1454, 0.0
  %vm1479 = vcmp.ge.f32.partialorder %v1457, 0.0
  %vm1480 = vcmp.ge.f32.partialorder %v1462, 0.0
  %vm1481 = vcmp.ge.f32.partialorder %v1465, 0.0
  %vm1482 = vcmp.ge.f32.partialorder %v1470, 0.0
  %vm1483 = vcmp.ge.f32.partialorder %v1473, 0.0
  %v1484 = vmul.f32 %v1446, 0.01
  %v1485 = vmul.f32 %v1449, 0.01
  %v1486 = vmul.f32 %v1454, 0.01
  %v1487 = vmul.f32 %v1457, 0.01
  %v1488 = vmul.f32 %v1462, 0.01
  %v1489 = vmul.f32 %v1465, 0.01
  %v1490 = vmul.f32 %v1470, 0.01
  %v1491 = vmul.f32 %v1473, 0.01
  %v1492 = vsel %vm1476, %v1446, %v1484
  %v1493 = vsel %vm1477, %v1449, %v1485
  %v1494 = vsel %vm1478, %v1454, %v1486
  %v1495 = vsel %vm1479, %v1457, %v1487
  %v1496 = vsel %vm1480, %v1462, %v1488
  %v1497 = vsel %vm1481, %v1465, %v1489
  %v1498 = vsel %vm1482, %v1470, %v1490
  %v1499 = vsel %vm1483, %v1473, %v1491
  %1500 = vst [vmem:[%s9] sm:$0xff] %v1492
  %1501 = vst [vmem:[%s9 + $0x8] sm:$0xff] %v1493
  %1502 = vst [vmem:[%s9 + $0x10] sm:$0xff] %v1494
  %1503 = vst [vmem:[%s9 + $0x18] sm:$0xff] %v1495
  %1504 = vst [vmem:[%s9 + $0x20] sm:$0xff] %v1496
  %1505 = vst [vmem:[%s9 + $0x28] sm:$0xff] %v1497
  %1506 = vst [vmem:[%s9 + $0x30] sm:$0xff] %v1498
  %1507 = vst [vmem:[%s9 + $0x38] sm:$0xff] %v1499
  %v1508 = vpack.c.bf16 %v1493, %v1492
  %v1509 = vpack.c.bf16 %v1495, %v1494
  %v1510 = vpack.c.bf16 %v1497, %v1496
  %v1511 = vpack.c.bf16 %v1499, %v1498
  %v1512 = vld [vmem:[%s5] sm:$0xf]
  %v1513 = vld [vmem:[%s5 + $0x4] sm:$0xf]
  %v1514 = vld [vmem:[%s5 + $0x8] sm:$0xf]
  %v1515 = vld [vmem:[%s5 + $0xc] sm:$0xf]
  %v1516 = vld [vmem:[%s5 + $0x10] sm:$0xf]
  %v1517 = vld [vmem:[%s5 + $0x14] sm:$0xf]
  %v1518 = vld [vmem:[%s5 + $0x18] sm:$0xf]
  %v1519 = vld [vmem:[%s5 + $0x1c] sm:$0xf]
  %v1520 = vld [vmem:[%s5 + $0x20] sm:$0xf]
  %v1521 = vld [vmem:[%s5 + $0x24] sm:$0xf]
  %v1522 = vld [vmem:[%s5 + $0x28] sm:$0xf]
  %v1523 = vld [vmem:[%s5 + $0x2c] sm:$0xf]
  %v1524 = vld [vmem:[%s5 + $0x30] sm:$0xf]
  %v1525 = vld [vmem:[%s5 + $0x34] sm:$0xf]
  %v1526 = vld [vmem:[%s5 + $0x38] sm:$0xf]
  %v1527 = vld [vmem:[%s5 + $0x3c] sm:$0xf]
  %v1544 = vunpack.c.l.b16 %v1512
  %v1545 = vunpack.c.l.b16 %v1513
  %v1546 = vunpack.c.l.b16 %v1514
  %v1547 = vunpack.c.l.b16 %v1515
  %v1548 = vunpack.c.l.b16 %v1516
  %v1549 = vunpack.c.l.b16 %v1517
  %v1550 = vunpack.c.l.b16 %v1518
  %v1551 = vunpack.c.l.b16 %v1519
  %v1552 = vunpack.c.l.b16 %v1520
  %v1553 = vunpack.c.l.b16 %v1521
  %v1554 = vunpack.c.l.b16 %v1522
  %v1555 = vunpack.c.l.b16 %v1523
  %v1556 = vunpack.c.l.b16 %v1524
  %v1557 = vunpack.c.l.b16 %v1525
  %v1558 = vunpack.c.l.b16 %v1526
  %v1559 = vunpack.c.l.b16 %v1527
  %v1560 = vpack.c.b16 %v1545, %v1544
  %v1561 = vpack.c.b16 %v1547, %v1546
  %v1562 = vpack.c.b16 %v1549, %v1548
  %v1563 = vpack.c.b16 %v1551, %v1550
  %v1564 = vpack.c.b16 %v1553, %v1552
  %v1565 = vpack.c.b16 %v1555, %v1554
  %v1566 = vpack.c.b16 %v1557, %v1556
  %v1567 = vpack.c.b16 %v1559, %v1558
  %1576 = vmatprep.subr.bf16.mxu0 0
  %1577 = vmatpush1.bf16.msra.mxu0 %v1560
  %1578 = vmatprep.subr.bf16.mxu0 0
  %1579 = vmatpush1.bf16.msra.mxu0 %v1561
  %1580 = vmatprep.subr.bf16.mxu0 0
  %1581 = vmatpush1.bf16.msra.mxu0 %v1562
  %1582 = vmatprep.subr.bf16.mxu0 0
  %1583 = vmatpush1.bf16.msra.mxu0 %v1563
  %1584 = vmatprep.subr.bf16.mxu0 0
  %1585 = vmatpush1.bf16.msra.mxu0 %v1564
  %1586 = vmatprep.subr.bf16.mxu0 0
  %1587 = vmatpush1.bf16.msra.mxu0 %v1565
  %1588 = vmatprep.subr.bf16.mxu0 0
  %1589 = vmatpush1.bf16.msra.mxu0 %v1566
  %1590 = vmatprep.subr.bf16.mxu0 0
  %1591 = vmatpush1.bf16.msra.mxu0 %v1567
  %1592 = vmatprep.subr.bf16.mxu0 0
  %1593 = vmatpush1.bf16.msra.mxu0 0
  %1594 = vmatprep.subr.bf16.mxu0 0
  %1595 = vmatpush1.bf16.msra.mxu0 0
  %1596 = vmatprep.subr.bf16.mxu0 0
  %1597 = vmatpush1.bf16.msra.mxu0 0
  %1598 = vmatprep.subr.bf16.mxu0 0
  %1599 = vmatpush1.bf16.msra.mxu0 0
  %1600 = vmatprep.subr.bf16.mxu0 0
  %1601 = vmatpush1.bf16.msra.mxu0 0
  %1602 = vmatprep.subr.bf16.mxu0 0
  %1603 = vmatpush1.bf16.msra.mxu0 0
  %1604 = vmatprep.subr.bf16.mxu0 0
  %1605 = vmatpush1.bf16.msra.mxu0 0
  %1606 = vmatprep.subr.bf16.mxu0 0
  %1607 = vmatpush1.bf16.msra.mxu0 0
  %1608 = vmatprep.mubr.bf16.mxu0 0
  %1609 = vmatmul.mubr.bf16.gmra.mrb[0].mxu0 %v1508
  %v1610 = vpop.f32.mrb[0].mxu0
  %v1611 = vadd.f32 0.0, %v1610
  %v1612 = vpop.f32.mrb[0].mxu0
  %v1613 = vpop.f32.mrb[0].mxu0
  %v1614 = vadd.f32 0.0, %v1613
  %v1615 = vpop.f32.mrb[0].mxu0
  %1616 = vmatprep.mubr.bf16.mxu0 0
  %1617 = vmatmul.mubr.bf16.gmra.mrb[0].mxu0 %v1509
  %v1618 = vpop.f32.mrb[0].mxu0
  %v1619 = vadd.f32 0.0, %v1618
  %v1620 = vpop.f32.mrb[0].mxu0
  %v1621 = vpop.f32.mrb[0].mxu0
  %v1622 = vadd.f32 0.0, %v1621
  %v1623 = vpop.f32.mrb[0].mxu0
  %1624 = vmatprep.mubr.bf16.mxu0 0
  %1625 = vmatmul.mubr.bf16.gmra.mrb[0].mxu0 %v1510
  %v1626 = vpop.f32.mrb[0].mxu0
  %v1627 = vadd.f32 0.0, %v1626
  %v1628 = vpop.f32.mrb[0].mxu0
  %v1629 = vpop.f32.mrb[0].mxu0
  %v1630 = vadd.f32 0.0, %v1629
  %v1631 = vpop.f32.mrb[0].mxu0
  %1632 = vmatprep.mubr.bf16.mxu0 0
  %1633 = vmatmul.mubr.bf16.gmra.mrb[0].mxu0 %v1511
  %v1634 = vpop.f32.mrb[0].mxu0
  %v1635 = vadd.f32 0.0, %v1634
  %v1636 = vpop.f32.mrb[0].mxu0
  %v1637 = vpop.f32.mrb[0].mxu0
  %v1638 = vadd.f32 0.0, %v1637
  %v1639 = vpop.f32.mrb[0].mxu0
  %1640 = vdwg.mxu0
  %vm1641 = vcmp.ge.f32.partialorder %v1611, 0.0
  %vm1642 = vcmp.ge.f32.partialorder %v1614, 0.0
  %vm1643 = vcmp.ge.f32.partialorder %v1619, 0.0
  %vm1644 = vcmp.ge.f32.partialorder %v1622, 0.0
  %vm1645 = vcmp.ge.f32.partialorder %v1627, 0.0
  %vm1646 = vcmp.ge.f32.partialorder %v1630, 0.0
  %vm1647 = vcmp.ge.f32.partialorder %v1635, 0.0
  %vm1648 = vcmp.ge.f32.partialorder %v1638, 0.0
  %v1649 = vmul.f32 %v1611, 0.01
  %v1650 = vmul.f32 %v1614, 0.01
  %v1651 = vmul.f32 %v1619, 0.01
  %v1652 = vmul.f32 %v1622, 0.01
  %v1653 = vmul.f32 %v1627, 0.01
  %v1654 = vmul.f32 %v1630, 0.01
  %v1655 = vmul.f32 %v1635, 0.01
  %v1656 = vmul.f32 %v1638, 0.01
  %v1657 = vsel %vm1641, %v1611, %v1649
  %v1658 = vsel %vm1642, %v1614, %v1650
  %v1659 = vsel %vm1643, %v1619, %v1651
  %v1660 = vsel %vm1644, %v1622, %v1652
  %v1661 = vsel %vm1645, %v1627, %v1653
  %v1662 = vsel %vm1646, %v1630, %v1654
  %v1663 = vsel %vm1647, %v1635, %v1655
  %v1664 = vsel %vm1648, %v1638, %v1656
  %v1665 = vpack.c.bf16 %v1658, %v1657
  %v1666 = vpack.c.bf16 %v1660, %v1659
  %v1667 = vpack.c.bf16 %v1662, %v1661
  %v1668 = vpack.c.bf16 %v1664, %v1663
  %v1669 = vld [vmem:[%s6] sm:$0xf]
  %v1670 = vld [vmem:[%s6 + $0x4] sm:$0xf]
  %v1671 = vld [vmem:[%s6 + $0x8] sm:$0xf]
  %v1672 = vld [vmem:[%s6 + $0xc] sm:$0xf]
  %v1673 = vld [vmem:[%s6 + $0x10] sm:$0xf]
  %v1674 = vld [vmem:[%s6 + $0x14] sm:$0xf]
  %v1675 = vld [vmem:[%s6 + $0x18] sm:$0xf]
  %v1676 = vld [vmem:[%s6 + $0x1c] sm:$0xf]
  %v1677 = vld [vmem:[%s6 + $0x20] sm:$0xf]
  %v1678 = vld [vmem:[%s6 + $0x24] sm:$0xf]
  %v1679 = vld [vmem:[%s6 + $0x28] sm:$0xf]
  %v1680 = vld [vmem:[%s6 + $0x2c] sm:$0xf]
  %v1681 = vld [vmem:[%s6 + $0x30] sm:$0xf]
  %v1682 = vld [vmem:[%s6 + $0x34] sm:$0xf]
  %v1683 = vld [vmem:[%s6 + $0x38] sm:$0xf]
  %v1684 = vld [vmem:[%s6 + $0x3c] sm:$0xf]
  %v1701 = vunpack.c.l.b16 %v1669
  %v1702 = vunpack.c.l.b16 %v1670
  %v1703 = vunpack.c.l.b16 %v1671
  %v1704 = vunpack.c.l.b16 %v1672
  %v1705 = vunpack.c.l.b16 %v1673
  %v1706 = vunpack.c.l.b16 %v1674
  %v1707 = vunpack.c.l.b16 %v1675
  %v1708 = vunpack.c.l.b16 %v1676
  %v1709 = vunpack.c.l.b16 %v1677
  %v1710 = vunpack.c.l.b16 %v1678
  %v1711 = vunpack.c.l.b16 %v1679
  %v1712 = vunpack.c.l.b16 %v1680
  %v1713 = vunpack.c.l.b16 %v1681
  %v1714 = vunpack.c.l.b16 %v1682
  %v1715 = vunpack.c.l.b16 %v1683
  %v1716 = vunpack.c.l.b16 %v1684
  %v1717 = vpack.c.b16 %v1702, %v1701
  %v1718 = vpack.c.b16 %v1704, %v1703
  %v1719 = vpack.c.b16 %v1706, %v1705
  %v1720 = vpack.c.b16 %v1708, %v1707
  %v1721 = vpack.c.b16 %v1710, %v1709
  %v1722 = vpack.c.b16 %v1712, %v1711
  %v1723 = vpack.c.b16 %v1714, %v1713
  %v1724 = vpack.c.b16 %v1716, %v1715
  %1733 = vmatprep.subr.bf16.mxu0 0
  %1734 = vmatpush1.bf16.msra.mxu0 %v1717
  %1735 = vmatprep.subr.bf16.mxu0 0
  %1736 = vmatpush1.bf16.msra.mxu0 %v1718
  %1737 = vmatprep.subr.bf16.mxu0 0
  %1738 = vmatpush1.bf16.msra.mxu0 %v1719
  %1739 = vmatprep.subr.bf16.mxu0 0
  %1740 = vmatpush1.bf16.msra.mxu0 %v1720
  %1741 = vmatprep.subr.bf16.mxu0 0
  %1742 = vmatpush1.bf16.msra.mxu0 %v1721
  %1743 = vmatprep.subr.bf16.mxu0 0
  %1744 = vmatpush1.bf16.msra.mxu0 %v1722
  %1745 = vmatprep.subr.bf16.mxu0 0
  %1746 = vmatpush1.bf16.msra.mxu0 %v1723
  %1747 = vmatprep.subr.bf16.mxu0 0
  %1748 = vmatpush1.bf16.msra.mxu0 %v1724
  %1749 = vmatprep.subr.bf16.mxu0 0
  %1750 = vmatpush1.bf16.msra.mxu0 0
  %1751 = vmatprep.subr.bf16.mxu0 0
  %1752 = vmatpush1.bf16.msra.mxu0 0
  %1753 = vmatprep.subr.bf16.mxu0 0
  %1754 = vmatpush1.bf16.msra.mxu0 0
  %1755 = vmatprep.subr.bf16.mxu0 0
  %1756 = vmatpush1.bf16.msra.mxu0 0
  %1757 = vmatprep.subr.bf16.mxu0 0
  %1758 = vmatpush1.bf16.msra.mxu0 0
  %1759 = vmatprep.subr.bf16.mxu0 0
  %1760 = vmatpush1.bf16.msra.mxu0 0
  %1761 = vmatprep.subr.bf16.mxu0 0
  %1762 = vmatpush1.bf16.msra.mxu0 0
  %1763 = vmatprep.subr.bf16.mxu0 0
  %1764 = vmatpush1.bf16.msra.mxu0 0
  %1765 = vmatprep.mubr.bf16.mxu0 0
  %1766 = vmatmul.mubr.bf16.gmra.mrb[0].mxu0 %v1665
  %v1767 = vpop.f32.mrb[0].mxu0
  %v1768 = vadd.f32 0.0, %v1767
  %v1769 = vpop.f32.mrb[0].mxu0
  %v1770 = vpop.f32.mrb[0].mxu0
  %v1771 = vadd.f32 0.0, %v1770
  %v1772 = vpop.f32.mrb[0].mxu0
  %1773 = vmatprep.mubr.bf16.mxu0 0
  %1774 = vmatmul.mubr.bf16.gmra.mrb[0].mxu0 %v1666
  %v1775 = vpop.f32.mrb[0].mxu0
  %v1776 = vadd.f32 0.0, %v1775
  %v1777 = vpop.f32.mrb[0].mxu0
  %v1778 = vpop.f32.mrb[0].mxu0
  %v1779 = vadd.f32 0.0, %v1778
  %v1780 = vpop.f32.mrb[0].mxu0
  %1781 = vmatprep.mubr.bf16.mxu0 0
  %1782 = vmatmul.mubr.bf16.gmra.mrb[0].mxu0 %v1667
  %v1783 = vpop.f32.mrb[0].mxu0
  %v1784 = vadd.f32 0.0, %v1783
  %v1785 = vpop.f32.mrb[0].mxu0
  %v1786 = vpop.f32.mrb[0].mxu0
  %v1787 = vadd.f32 0.0, %v1786
  %v1788 = vpop.f32.mrb[0].mxu0
  %1789 = vmatprep.mubr.bf16.mxu0 0
  %1790 = vmatmul.mubr.bf16.gmra.mrb[0].mxu0 %v1668
  %v1791 = vpop.f32.mrb[0].mxu0
  %v1792 = vadd.f32 0.0, %v1791
  %v1793 = vpop.f32.mrb[0].mxu0
  %v1794 = vpop.f32.mrb[0].mxu0
  %v1795 = vadd.f32 0.0, %v1794
  %v1796 = vpop.f32.mrb[0].mxu0
  %1797 = vdwg.mxu0
  %vm1798 = vcmp.ge.f32.partialorder %v1768, 0.0
  %vm1799 = vcmp.ge.f32.partialorder %v1771, 0.0
  %vm1800 = vcmp.ge.f32.partialorder %v1776, 0.0
  %vm1801 = vcmp.ge.f32.partialorder %v1779, 0.0
  %vm1802 = vcmp.ge.f32.partialorder %v1784, 0.0
  %vm1803 = vcmp.ge.f32.partialorder %v1787, 0.0
  %vm1804 = vcmp.ge.f32.partialorder %v1792, 0.0
  %vm1805 = vcmp.ge.f32.partialorder %v1795, 0.0
  %v1806 = vmul.f32 %v1768, 0.01
  %v1807 = vmul.f32 %v1771, 0.01
  %v1808 = vmul.f32 %v1776, 0.01
  %v1809 = vmul.f32 %v1779, 0.01
  %v1810 = vmul.f32 %v1784, 0.01
  %v1811 = vmul.f32 %v1787, 0.01
  %v1812 = vmul.f32 %v1792, 0.01
  %v1813 = vmul.f32 %v1795, 0.01
  %v1814 = vsel %vm1798, %v1768, %v1806
  %v1815 = vsel %vm1799, %v1771, %v1807
  %v1816 = vsel %vm1800, %v1776, %v1808
  %v1817 = vsel %vm1801, %v1779, %v1809
  %v1818 = vsel %vm1802, %v1784, %v1810
  %v1819 = vsel %vm1803, %v1787, %v1811
  %v1820 = vsel %vm1804, %v1792, %v1812
  %v1821 = vsel %vm1805, %v1795, %v1813
  %v1822 = vpack.c.bf16 %v1815, %v1814
  %v1823 = vpack.c.bf16 %v1817, %v1816
  %v1824 = vpack.c.bf16 %v1819, %v1818
  %v1825 = vpack.c.bf16 %v1821, %v1820
  %v1826 = vld [vmem:[%s7] sm:$0xf]
  %v1827 = vld [vmem:[%s7 + $0x4] sm:$0xf]
  %v1828 = vld [vmem:[%s7 + $0x8] sm:$0xf]
  %v1829 = vld [vmem:[%s7 + $0xc] sm:$0xf]
  %v1830 = vld [vmem:[%s7 + $0x10] sm:$0xf]
  %v1831 = vld [vmem:[%s7 + $0x14] sm:$0xf]
  %v1832 = vld [vmem:[%s7 + $0x18] sm:$0xf]
  %v1833 = vld [vmem:[%s7 + $0x1c] sm:$0xf]
  %v1834 = vld [vmem:[%s7 + $0x20] sm:$0xf]
  %v1835 = vld [vmem:[%s7 + $0x24] sm:$0xf]
  %v1836 = vld [vmem:[%s7 + $0x28] sm:$0xf]
  %v1837 = vld [vmem:[%s7 + $0x2c] sm:$0xf]
  %v1838 = vld [vmem:[%s7 + $0x30] sm:$0xf]
  %v1839 = vld [vmem:[%s7 + $0x34] sm:$0xf]
  %v1840 = vld [vmem:[%s7 + $0x38] sm:$0xf]
  %v1841 = vld [vmem:[%s7 + $0x3c] sm:$0xf]
  %v1858 = vunpack.c.l.b16 %v1826
  %v1859 = vunpack.c.l.b16 %v1827
  %v1860 = vunpack.c.l.b16 %v1828
  %v1861 = vunpack.c.l.b16 %v1829
  %v1862 = vunpack.c.l.b16 %v1830
  %v1863 = vunpack.c.l.b16 %v1831
  %v1864 = vunpack.c.l.b16 %v1832
  %v1865 = vunpack.c.l.b16 %v1833
  %v1866 = vunpack.c.l.b16 %v1834
  %v1867 = vunpack.c.l.b16 %v1835
  %v1868 = vunpack.c.l.b16 %v1836
  %v1869 = vunpack.c.l.b16 %v1837
  %v1870 = vunpack.c.l.b16 %v1838
  %v1871 = vunpack.c.l.b16 %v1839
  %v1872 = vunpack.c.l.b16 %v1840
  %v1873 = vunpack.c.l.b16 %v1841
  %v1874 = vpack.c.b16 %v1859, %v1858
  %v1875 = vpack.c.b16 %v1861, %v1860
  %v1876 = vpack.c.b16 %v1863, %v1862
  %v1877 = vpack.c.b16 %v1865, %v1864
  %v1878 = vpack.c.b16 %v1867, %v1866
  %v1879 = vpack.c.b16 %v1869, %v1868
  %v1880 = vpack.c.b16 %v1871, %v1870
  %v1881 = vpack.c.b16 %v1873, %v1872
  %1890 = vmatprep.subr.bf16.mxu0 0
  %1891 = vmatpush1.bf16.msra.mxu0 %v1874
  %1892 = vmatprep.subr.bf16.mxu0 0
  %1893 = vmatpush1.bf16.msra.mxu0 %v1875
  %1894 = vmatprep.subr.bf16.mxu0 0
  %1895 = vmatpush1.bf16.msra.mxu0 %v1876
  %1896 = vmatprep.subr.bf16.mxu0 0
  %1897 = vmatpush1.bf16.msra.mxu0 %v1877
  %1898 = vmatprep.subr.bf16.mxu0 0
  %1899 = vmatpush1.bf16.msra.mxu0 %v1878
  %1900 = vmatprep.subr.bf16.mxu0 0
  %1901 = vmatpush1.bf16.msra.mxu0 %v1879
  %1902 = vmatprep.subr.bf16.mxu0 0
  %1903 = vmatpush1.bf16.msra.mxu0 %v1880
  %1904 = vmatprep.subr.bf16.mxu0 0
  %1905 = vmatpush1.bf16.msra.mxu0 %v1881
  %1906 = vmatprep.subr.bf16.mxu0 0
  %1907 = vmatpush1.bf16.msra.mxu0 0
  %1908 = vmatprep.subr.bf16.mxu0 0
  %1909 = vmatpush1.bf16.msra.mxu0 0
  %1910 = vmatprep.subr.bf16.mxu0 0
  %1911 = vmatpush1.bf16.msra.mxu0 0
  %1912 = vmatprep.subr.bf16.mxu0 0
  %1913 = vmatpush1.bf16.msra.mxu0 0
  %1914 = vmatprep.subr.bf16.mxu0 0
  %1915 = vmatpush1.bf16.msra.mxu0 0
  %1916 = vmatprep.subr.bf16.mxu0 0
  %1917 = vmatpush1.bf16.msra.mxu0 0
  %1918 = vmatprep.subr.bf16.mxu0 0
  %1919 = vmatpush1.bf16.msra.mxu0 0
  %1920 = vmatprep.subr.bf16.mxu0 0
  %1921 = vmatpush1.bf16.msra.mxu0 0
  %1922 = vmatprep.mubr.bf16.mxu0 0
  %1923 = vmatmul.mubr.bf16.gmra.mrb[0].mxu0 %v1822
  %v1924 = vpop.f32.mrb[0].mxu0
  %v1925 = vadd.f32 0.0, %v1924
  %v1926 = vpop.f32.mrb[0].mxu0
  %v1927 = vpop.f32.mrb[0].mxu0
  %v1928 = vadd.f32 0.0, %v1927
  %v1929 = vpop.f32.mrb[0].mxu0
  %1930 = vmatprep.mubr.bf16.mxu0 0
  %1931 = vmatmul.mubr.bf16.gmra.mrb[0].mxu0 %v1823
  %v1932 = vpop.f32.mrb[0].mxu0
  %v1933 = vadd.f32 0.0, %v1932
  %v1934 = vpop.f32.mrb[0].mxu0
  %v1935 = vpop.f32.mrb[0].mxu0
  %v1936 = vadd.f32 0.0, %v1935
  %v1937 = vpop.f32.mrb[0].mxu0
  %1938 = vmatprep.mubr.bf16.mxu0 0
  %1939 = vmatmul.mubr.bf16.gmra.mrb[0].mxu0 %v1824
  %v1940 = vpop.f32.mrb[0].mxu0
  %v1941 = vadd.f32 0.0, %v1940
  %v1942 = vpop.f32.mrb[0].mxu0
  %v1943 = vpop.f32.mrb[0].mxu0
  %v1944 = vadd.f32 0.0, %v1943
  %v1945 = vpop.f32.mrb[0].mxu0
  %1946 = vmatprep.mubr.bf16.mxu0 0
  %1947 = vmatmul.mubr.bf16.gmra.mrb[0].mxu0 %v1825
  %v1948 = vpop.f32.mrb[0].mxu0
  %v1949 = vadd.f32 0.0, %v1948
  %v1950 = vpop.f32.mrb[0].mxu0
  %v1951 = vpop.f32.mrb[0].mxu0
  %v1952 = vadd.f32 0.0, %v1951
  %v1953 = vpop.f32.mrb[0].mxu0
  %1954 = vdwg.mxu0
  %v1955 = vlaneseq
  %v1956 = vand.u32 %v1955, 127
  %vm1957 = vcmp.lt.s32.totalorder %v1956, 10
  %v1958 = vsel %vm1957, %v1925, -1e+30
  %v1959 = vsel %vm1957, %v1928, -1e+30
  %v1960 = vsel %vm1957, %v1933, -1e+30
  %v1961 = vsel %vm1957, %v1936, -1e+30
  %v1962 = vsel %vm1957, %v1941, -1e+30
  %v1963 = vsel %vm1957, %v1944, -1e+30
  %v1964 = vsel %vm1957, %v1949, -1e+30
  %v1965 = vsel %vm1957, %v1952, -1e+30
  %1966 = vmax.xlane.f32.xlu0 %v1958
  %v1967 = vpop.xlane.xlu0 %1966
  %1968 = vmax.xlane.f32.xlu0 %v1959
  %v1969 = vpop.xlane.xlu0 %1968
  %1970 = vmax.xlane.f32.xlu0 %v1960
  %v1971 = vpop.xlane.xlu0 %1970
  %1972 = vmax.xlane.f32.xlu0 %v1961
  %v1973 = vpop.xlane.xlu0 %1972
  %1974 = vmax.xlane.f32.xlu0 %v1962
  %v1975 = vpop.xlane.xlu0 %1974
  %1976 = vmax.xlane.f32.xlu0 %v1963
  %v1977 = vpop.xlane.xlu0 %1976
  %1978 = vmax.xlane.f32.xlu0 %v1964
  %v1979 = vpop.xlane.xlu0 %1978
  %1980 = vmax.xlane.f32.xlu0 %v1965
  %v1981 = vpop.xlane.xlu0 %1980
  %v1982 = vsub.f32 %v1958, %v1967
  %v1983 = vsub.f32 %v1959, %v1969
  %v1984 = vsub.f32 %v1960, %v1971
  %v1985 = vsub.f32 %v1961, %v1973
  %v1986 = vsub.f32 %v1962, %v1975
  %v1987 = vsub.f32 %v1963, %v1977
  %v1988 = vsub.f32 %v1964, %v1979
  %v1989 = vsub.f32 %v1965, %v1981
  %v1990 = vmul.f32 %v1982, 1.442695
  %v1991 = vpow.pop %v1990
  %v1992 = vmul.f32 %v1983, 1.442695
  %v1993 = vpow.pop %v1992
  %v1994 = vmul.f32 %v1984, 1.442695
  %v1995 = vpow.pop %v1994
  %v1996 = vmul.f32 %v1985, 1.442695
  %v1997 = vpow.pop %v1996
  %v1998 = vmul.f32 %v1986, 1.442695
  %v1999 = vpow.pop %v1998
  %v2000 = vmul.f32 %v1987, 1.442695
  %v2001 = vpow.pop %v2000
  %v2002 = vmul.f32 %v1988, 1.442695
  %v2003 = vpow.pop %v2002
  %v2004 = vmul.f32 %v1989, 1.442695
  %v2005 = vpow.pop %v2004
  %2006 = vadd.xlane.f32.xlu0 %v1991
  %v2007 = vpop.xlane.xlu0 %2006
  %2008 = vadd.xlane.f32.xlu0 %v1993
  %v2009 = vpop.xlane.xlu0 %2008
  %2010 = vadd.xlane.f32.xlu0 %v1995
  %v2011 = vpop.xlane.xlu0 %2010
  %2012 = vadd.xlane.f32.xlu0 %v1997
  %v2013 = vpop.xlane.xlu0 %2012
  %2014 = vadd.xlane.f32.xlu0 %v1999
  %v2015 = vpop.xlane.xlu0 %2014
  %2016 = vadd.xlane.f32.xlu0 %v2001
  %v2017 = vpop.xlane.xlu0 %2016
  %2018 = vadd.xlane.f32.xlu0 %v2003
  %v2019 = vpop.xlane.xlu0 %2018
  %2020 = vadd.xlane.f32.xlu0 %v2005
  %v2021 = vpop.xlane.xlu0 %2020
  %v2022 = vrcp.pop %v2007
  %v2023 = vrcp.pop %v2009
  %v2024 = vrcp.pop %v2011
  %v2025 = vrcp.pop %v2013
  %v2026 = vrcp.pop %v2015
  %v2027 = vrcp.pop %v2017
  %v2028 = vrcp.pop %v2019
  %v2029 = vrcp.pop %v2021
  %v2030 = vmul.f32 %v1991, %v2022
  %v2031 = vmul.f32 %v1993, %v2023
  %v2032 = vmul.f32 %v1995, %v2024
  %v2033 = vmul.f32 %v1997, %v2025
  %v2034 = vmul.f32 %v1999, %v2026
  %v2035 = vmul.f32 %v2001, %v2027
  %v2036 = vmul.f32 %v2003, %v2028
  %v2037 = vmul.f32 %v2005, %v2029
  %2038 = vst [vmem:[%s8] sm:$0xff] %v2030
  %2039 = vst [vmem:[%s8 + $0x8] sm:$0xff] %v2031
  %2040 = vst [vmem:[%s8 + $0x10] sm:$0xff] %v2032
  %2041 = vst [vmem:[%s8 + $0x18] sm:$0xff] %v2033
  %2042 = vst [vmem:[%s8 + $0x20] sm:$0xff] %v2034
  %2043 = vst [vmem:[%s8 + $0x28] sm:$0xff] %v2035
  %2044 = vst [vmem:[%s8 + $0x30] sm:$0xff] %v2036
  %2045 = vst [vmem:[%s8 + $0x38] sm:$0xff] %v2037
  // Predicated region
  $region34: #{net_forward.1} parent=0 // pred_check
    _
  $region35: #{net_forward.1} parent=0 // pred_check_branch
    %2047 = sbr.rel (0) target = $region37
  $region36: #{net_forward.1} parent=0 // pred_region
    _
  $region37: #{net_forward.1} parent=0 // pred_fallthru
    _
  // Predicated region
  $region38: #{net_forward.1} parent=0 // pred_check
    _
  $region39: #{net_forward.1} parent=0 // pred_check_branch
    %2049 = sbr.rel (0) target = $region41
  $region40: #{net_forward.1} parent=0 // pred_region
    _
  $region41: #{net_forward.1} parent=0 // pred_fallthru
    _
  // Predicated region
  $region42: #{net_forward.1} parent=0 // pred_check
    _
  $region43: #{net_forward.1} parent=0 // pred_check_branch
    %2051 = sbr.rel (0) target = $region45
  $region44: #{net_forward.1} parent=0 // pred_region
    _
  $region45: #{net_forward.1} parent=0 // pred_fallthru
    _
  // Predicated region
  $region46: #{net_forward.1} parent=0 // pred_check
    _
  $region47: #{net_forward.1} parent=0 // pred_check_branch
    %2053 = sbr.rel (0) target = $region49
  $region48: #{net_forward.1} parent=0 // pred_region
    _
  $region49: #{net_forward.1} parent=0 // pred_fallthru
    _
  // Predicated region
  $region50: #{net_forward.1} parent=0 // pred_check
    _
  $region51: #{net_forward.1} parent=0 // pred_check_branch
    %2055 = sbr.rel (0) target = $region53
  $region52: #{net_forward.1} parent=0 // pred_region
    _
  $region53: #{net_forward.1} parent=0 // pred_fallthru
    _
  // Predicated region
  $region54: #{net_forward.1} parent=0 // pred_check
    _
  $region55: #{net_forward.1} parent=0 // pred_check_branch
    %2057 = sbr.rel (0) target = $region57
  $region56: #{net_forward.1} parent=0 // pred_region
    _
  $region57: #{net_forward.1} parent=0 // pred_fallthru
    _

</llo_original>
